<compile_context>
chip_gen: v7x
topology: tpu7x:2x2x1
jax: 0.10.0
libtpu: 0.0.40
codegen_flags: <defaults>
</compile_context>

<pallas_src>
import jax
import jax.numpy as jnp
from jax.experimental import pallas as pl
from jax.experimental.pallas import tpu as pltpu  # noqa: F401  (kept for TPU-specific params if scaled up)

# ---------------- model hyper-parameters (small, synthetic) ----------------
B = 2          # batch
Z_DIM = 32     # latent dim
NUM_WS = 4     # number of w broadcasts / synthesis layers
C0 = 32        # feature channels inside synthesis
H = W = 16     # spatial resolution
HW = H * W     # 256 = 2 x 128 lanes -> unmasked vector stores
RGB = 3        # output image channels
LRELU = 0.2


def _lrelu(x):
    return jnp.where(x >= 0, x, LRELU * x)


# --------------------------- Pallas kernels --------------------------------
def _conv_stack(x0, scales, WcT_ref, bc_ref, WrgbT_ref, brgb_ref):
    """Modulated 1x1-conv stack for ONE batch element, channels-first layout.

    x0        : [C0, HW]         feature map (HW lane-dense)
    scales    : NUM_WS arrays of shape [C0]  == (1 + style) per layer
    WcT_ref   : [NUM_WS, C0, C0] per-layer Wc^T
    bc_ref    : [NUM_WS, C0, 1]
    WrgbT_ref : [RGB, C0], brgb_ref : [RGB, 1]
    returns   : [RGB, HW]
    """
    x = x0
    for i in range(NUM_WS):
        # fold modulation into the small weight instead of the big activation:
        #   y^T = (Wc^T * (1+style)[None, :]) @ x^T
        wmod = WcT_ref[i] * scales[i][None, :]
        x = jnp.dot(wmod, x, preferred_element_type=jnp.float32) + bc_ref[i]
        x = _lrelu(x)
    return jnp.dot(WrgbT_ref[...], x, preferred_element_type=jnp.float32) + brgb_ref[...]


def _gen_z_kernel(z_ref, wmap_ref, bmap_ref, const_ref, Aflat_ref, baflat_ref,
                  WcT_ref, bc_ref, WrgbT_ref, brgb_ref, o_ref):
    # Fully fused z -> image. One invocation, whole batch.
    # mapping: w = lrelu(z @ Wmap + bmap)                         [B, Z]
    h = jnp.dot(z_ref[...], wmap_ref[...], preferred_element_type=jnp.float32) + bmap_ref[...]
    w = _lrelu(h)
    # all per-layer styles in ONE dot: [B, Z] @ [Z, NUM_WS*C0] -> [B, NUM_WS*C0]
    styles = jnp.dot(w, Aflat_ref[...], preferred_element_type=jnp.float32) + baflat_ref[...]
    x0 = const_ref[...]                                           # [C0, HW]
    for b in range(o_ref.shape[0]):                               # static unroll over tiny batch
        scales = [1.0 + styles[b, i * C0:(i + 1) * C0] for i in range(NUM_WS)]
        o_ref[b] = _conv_stack(x0, scales, WcT_ref, bc_ref,
                               WrgbT_ref, brgb_ref).astype(o_ref.dtype)


def _synthesis_kernel(ws_ref, const_ref, A_ref, ba_ref, WcT_ref, bc_ref,
                      WrgbT_ref, brgb_ref, o_ref):
    # General synthesis path (per-layer w may differ): ws [B, NUM_WS, Z] -> [B, RGB, HW]
    ws = ws_ref[...].astype(jnp.float32)
    # per-layer style dot over the whole batch at once: [B, Z] @ [Z, C0]
    styles = [jnp.dot(ws[:, i, :], A_ref[i], preferred_element_type=jnp.float32)
              + ba_ref[i][None, :] for i in range(NUM_WS)]
    x0 = const_ref[...]
    for b in range(o_ref.shape[0]):
        scales = [1.0 + styles[i][b] for i in range(NUM_WS)]
        o_ref[b] = _conv_stack(x0, scales, WcT_ref, bc_ref,
                               WrgbT_ref, brgb_ref).astype(o_ref.dtype)


def _full_spec(shape):
    """Whole-array block (grid is empty -> index_map takes no args)."""
    zeros = (0,) * len(shape)
    return pl.BlockSpec(shape, lambda: zeros)


# --------------------------- generator model --------------------------------
class _MappingMeta:
    """Mirrors `model.mapping.num_ws` accessed by the PyTorch Wrapper."""
    def __init__(self, num_ws):
        self.num_ws = num_ws


class StyleGANModel:
    """Tiny StyleGAN-like generator; heavy math runs in fused Pallas kernels."""

    def __init__(self, key):
        ks = jax.random.split(key, 6)
        s = 0.1
        f32 = jnp.float32
        self.wmap = (jax.random.normal(ks[0], (Z_DIM, Z_DIM)) * s).astype(f32)
        self.bmap = jnp.zeros((1, Z_DIM), f32)
        # learned constant stored channels-first [C0, HW] so HW(=256) sits on lanes
        self.const = (jax.random.normal(ks[1], (C0, HW)) * s).astype(f32)
        self.A = (jax.random.normal(ks[2], (NUM_WS, Z_DIM, C0)) * s).astype(f32)
        self.ba = jnp.zeros((NUM_WS, C0), f32)
        Wc = (jax.random.normal(ks[3], (NUM_WS, C0, C0)) * s).astype(f32)
        self.WcT = jnp.transpose(Wc, (0, 2, 1))              # per-layer Wc^T  [NUM_WS, C0, C0]
        self.bc = jnp.zeros((NUM_WS, C0, 1), f32)
        Wrgb = (jax.random.normal(ks[4], (C0, RGB)) * s).astype(f32)
        self.WrgbT = Wrgb.T                                    # [RGB, C0]
        self.brgb = jnp.zeros((RGB, 1), f32)
        # flattened style affine for the fused z path: A_flat[:, i*C0:(i+1)*C0] == A[i]
        self.A_flat = jnp.transpose(self.A, (1, 0, 2)).reshape(Z_DIM, NUM_WS * C0)
        self.ba_flat = self.ba.reshape(1, NUM_WS * C0)
        self.mapping = _MappingMeta(NUM_WS)                    # model.mapping.num_ws

    # ---- full generator (z path): model(z, c) ----
    def __call__(self, z, c=None):
        b = z.shape[0]
        out = pl.pallas_call(
            _gen_z_kernel,
            out_shape=jax.ShapeDtypeStruct((b, RGB, HW), jnp.float32),
            in_specs=[_full_spec((b, Z_DIM)),
                      _full_spec((Z_DIM, Z_DIM)),
                      _full_spec((1, Z_DIM)),
                      _full_spec((C0, HW)),
                      _full_spec((Z_DIM, NUM_WS * C0)),
                      _full_spec((1, NUM_WS * C0)),
                      _full_spec((NUM_WS, C0, C0)),
                      _full_spec((NUM_WS, C0, 1)),
                      _full_spec((RGB, C0)),
                      _full_spec((RGB, 1))],
            out_specs=_full_spec((b, RGB, HW)),
        )(z, self.wmap, self.bmap, self.const, self.A_flat, self.ba_flat,
          self.WcT, self.bc, self.WrgbT, self.brgb)
        # lane-dense [B, RGB, HW] -> NCHW is a free reshape (no transpose)
        return out.reshape(b, RGB, H, W)

    # ---- synthesis network: w [B, NUM_WS, Z] -> image [B, 3, H, W] (NCHW) ----
    def synthesis(self, ws):
        b = ws.shape[0]
        out = pl.pallas_call(
            _synthesis_kernel,
            out_shape=jax.ShapeDtypeStruct((b, RGB, HW), jnp.float32),
            in_specs=[_full_spec((b, NUM_WS, Z_DIM)),
                      _full_spec((C0, HW)),
                      _full_spec((NUM_WS, Z_DIM, C0)),
                      _full_spec((NUM_WS, C0)),
                      _full_spec((NUM_WS, C0, C0)),
                      _full_spec((NUM_WS, C0, 1)),
                      _full_spec((RGB, C0)),
                      _full_spec((RGB, 1))],
            out_specs=_full_spec((b, RGB, HW)),
        )(ws, self.const, self.A, self.ba, self.WcT, self.bc, self.WrgbT, self.brgb)
        return out.reshape(b, RGB, H, W)


# ------------------------------ Wrapper --------------------------------------
class Wrapper:
    """JAX port of the PyTorch Wrapper forward semantics."""

    def __init__(self, latent, model_name, model, z_dim):
        self.model, self.z_dim = model, z_dim
        self.latent = latent
        self.is_style = model_name.startswith('stylegan')

    def __call__(self, param):
        if self.latent == 'z':
            if self.is_style:
                image = self.model(param, None)
            else:
                image = self.model(param)
        else:
            assert self.is_style
            if self.latent == 'w':
                # param.repeat(1, num_ws, 1) in PyTorch == tile
                param = jnp.tile(param, (1, self.model.mapping.num_ws, 1))
            image = self.model.synthesis(param)
        return image


# --------------------------- pure-JAX reference ------------------------------
_HP = jax.lax.Precision.HIGHEST


def _ref_synthesis(model, ws):
    Wc = jnp.transpose(model.WcT, (0, 2, 1))       # [NUM_WS, C0_in, C0_out]
    Wrgb = model.WrgbT.T                            # [C0, RGB]
    imgs = []
    for b in range(ws.shape[0]):
        x = model.const.T                           # [HW, C0]
        for i in range(NUM_WS):
            style = jnp.dot(ws[b, i][None, :], model.A[i], precision=_HP) + model.ba[i][None, :]
            x = x * (1.0 + style)
            x = jnp.dot(x, Wc[i], precision=_HP) + model.bc[i, :, 0][None, :]
            x = jnp.where(x >= 0, x, LRELU * x)
        rgb = jnp.dot(x, Wrgb, precision=_HP) + model.brgb[:, 0][None, :]
        imgs.append(rgb)
    out = jnp.stack(imgs).reshape(ws.shape[0], H, W, RGB)
    return jnp.transpose(out, (0, 3, 1, 2))


def _ref_forward_z(model, z):
    h = jnp.dot(z, model.wmap, precision=_HP) + model.bmap
    w = jnp.where(h >= 0, h, LRELU * h)
    ws = jnp.tile(w[:, None, :], (1, NUM_WS, 1))
    return _ref_synthesis(model, ws)


# ------------------------------ main -----------------------------------------
if __name__ == "__main__":
    key = jax.random.PRNGKey(0)
    k_in, k_model = jax.random.split(key)

    model = StyleGANModel(k_model)

    # latent == 'w' path: param is [B, 1, z_dim], repeated over num_ws
    wrapper_w = Wrapper(latent='w', model_name='stylegan2', model=model, z_dim=Z_DIM)
    param_w = jax.random.normal(k_in, (B, 1, Z_DIM), dtype=jnp.float32)
    img_w = wrapper_w(param_w)
    jax.block_until_ready(img_w)
    assert img_w.shape == (B, RGB, H, W), img_w.shape
    ref_w = _ref_synthesis(model, jnp.tile(param_w, (1, NUM_WS, 1)))
    assert jnp.allclose(img_w, ref_w, rtol=5e-2, atol=1e-3), \
        float(jnp.max(jnp.abs(img_w - ref_w)))

    # latent == 'z' path: param is [B, z_dim], model(param, None)
    wrapper_z = Wrapper(latent='z', model_name='stylegan2', model=model, z_dim=Z_DIM)
    param_z = jax.random.normal(k_in, (B, Z_DIM), dtype=jnp.float32)
    img_z = wrapper_z(param_z)
    jax.block_until_ready(img_z)
    assert img_z.shape == (B, RGB, H, W), img_z.shape
    ref_z = _ref_forward_z(model, param_z)
    assert jnp.allclose(img_z, ref_z, rtol=5e-2, atol=1e-3), \
        float(jnp.max(jnp.abs(img_z - ref_z)))

    print("KERNEL_OK")
</pallas_src>

<mosaic_0001>
module attributes {stable_mosaic.version = 11 : i64} {
  func.func @_synthesis_kernel(%arg0: memref<2x4x32xf32, #tpu.memory_space<vmem>>, %arg1: memref<32x256xf32, #tpu.memory_space<vmem>>, %arg2: memref<4x32x32xf32, #tpu.memory_space<vmem>>, %arg3: memref<4x32xf32, #tpu.memory_space<vmem>>, %arg4: memref<4x32x32xf32, #tpu.memory_space<vmem>>, %arg5: memref<4x32x1xf32, #tpu.memory_space<vmem>>, %arg6: memref<3x32xf32, #tpu.memory_space<vmem>>, %arg7: memref<3x1xf32, #tpu.memory_space<vmem>>, %arg8: memref<2x3x256xf32, #tpu.memory_space<vmem>>) attributes {dimension_semantics = [], scalar_prefetch = 0 : i64, scratch_operands = 0 : i64, tpu.core_type = #tpu.core_type<tc>} {
    %c0 = arith.constant 0 : index
    %c0_0 = arith.constant 0 : index
    %c0_1 = arith.constant 0 : index
    %0 = vector.load %arg0[%c0, %c0_0, %c0_1] : memref<2x4x32xf32, #tpu.memory_space<vmem>>, vector<2x4x32xf32>
    %1 = vector.extract_strided_slice %0 {offsets = [0, 0, 0], sizes = [2, 1, 32], strides = [1, 1, 1]} : vector<2x4x32xf32> to vector<2x1x32xf32>
    %2 = vector.shape_cast %1 : vector<2x1x32xf32> to vector<2x32xf32>
    %c0_2 = arith.constant 0 : index
    %c0_3 = arith.constant 0 : index
    %c0_4 = arith.constant 0 : index
    %3 = vector.load %arg2[%c0_2, %c0_3, %c0_4] : memref<4x32x32xf32, #tpu.memory_space<vmem>>, vector<1x32x32xf32>
    %4 = vector.shape_cast %3 : vector<1x32x32xf32> to vector<32x32xf32>
    %cst = arith.constant dense<0.000000e+00> : vector<2x32xf32>
    %5 = tpu.matmul %2, %4, %cst {dimension_numbers = #tpu.dot_dimension_numbers<[1], [0], [0], [1], [0, 0, 1, 1], [], []>} : vector<2x32xf32>, vector<32x32xf32>, vector<2x32xf32> -> vector<2x32xf32>
    %c0_5 = arith.constant 0 : index
    %c0_6 = arith.constant 0 : index
    %6 = vector.load %arg3[%c0_5, %c0_6] : memref<4x32xf32, #tpu.memory_space<vmem>>, vector<1x32xf32>
    %7 = vector.shape_cast %6 : vector<1x32xf32> to vector<32xf32>
    %8 = vector.shape_cast %7 : vector<32xf32> to vector<1x32xf32>
    %9 = vector.broadcast %8 : vector<1x32xf32> to vector<2x32xf32>
    %10 = arith.addf %5, %9 : vector<2x32xf32>
    %11 = vector.extract_strided_slice %0 {offsets = [0, 1, 0], sizes = [2, 1, 32], strides = [1, 1, 1]} : vector<2x4x32xf32> to vector<2x1x32xf32>
    %12 = vector.shape_cast %11 : vector<2x1x32xf32> to vector<2x32xf32>
    %c1 = arith.constant 1 : index
    %c0_7 = arith.constant 0 : index
    %c0_8 = arith.constant 0 : index
    %13 = vector.load %arg2[%c1, %c0_7, %c0_8] : memref<4x32x32xf32, #tpu.memory_space<vmem>>, vector<1x32x32xf32>
    %14 = vector.shape_cast %13 : vector<1x32x32xf32> to vector<32x32xf32>
    %cst_9 = arith.constant dense<0.000000e+00> : vector<2x32xf32>
    %15 = tpu.matmul %12, %14, %cst_9 {dimension_numbers = #tpu.dot_dimension_numbers<[1], [0], [0], [1], [0, 0, 1, 1], [], []>} : vector<2x32xf32>, vector<32x32xf32>, vector<2x32xf32> -> vector<2x32xf32>
    %c1_10 = arith.constant 1 : index
    %c0_11 = arith.constant 0 : index
    %16 = vector.load %arg3[%c1_10, %c0_11] : memref<4x32xf32, #tpu.memory_space<vmem>>, vector<1x32xf32>
    %17 = vector.shape_cast %16 : vector<1x32xf32> to vector<32xf32>
    %18 = vector.shape_cast %17 : vector<32xf32> to vector<1x32xf32>
    %19 = vector.broadcast %18 : vector<1x32xf32> to vector<2x32xf32>
    %20 = arith.addf %15, %19 : vector<2x32xf32>
    %21 = vector.extract_strided_slice %0 {offsets = [0, 2, 0], sizes = [2, 1, 32], strides = [1, 1, 1]} : vector<2x4x32xf32> to vector<2x1x32xf32>
    %22 = vector.shape_cast %21 : vector<2x1x32xf32> to vector<2x32xf32>
    %c2 = arith.constant 2 : index
    %c0_12 = arith.constant 0 : index
    %c0_13 = arith.constant 0 : index
    %23 = vector.load %arg2[%c2, %c0_12, %c0_13] : memref<4x32x32xf32, #tpu.memory_space<vmem>>, vector<1x32x32xf32>
    %24 = vector.shape_cast %23 : vector<1x32x32xf32> to vector<32x32xf32>
    %cst_14 = arith.constant dense<0.000000e+00> : vector<2x32xf32>
    %25 = tpu.matmul %22, %24, %cst_14 {dimension_numbers = #tpu.dot_dimension_numbers<[1], [0], [0], [1], [0, 0, 1, 1], [], []>} : vector<2x32xf32>, vector<32x32xf32>, vector<2x32xf32> -> vector<2x32xf32>
    %c2_15 = arith.constant 2 : index
    %c0_16 = arith.constant 0 : index
    %26 = vector.load %arg3[%c2_15, %c0_16] : memref<4x32xf32, #tpu.memory_space<vmem>>, vector<1x32xf32>
    %27 = vector.shape_cast %26 : vector<1x32xf32> to vector<32xf32>
    %28 = vector.shape_cast %27 : vector<32xf32> to vector<1x32xf32>
    %29 = vector.broadcast %28 : vector<1x32xf32> to vector<2x32xf32>
    %30 = arith.addf %25, %29 : vector<2x32xf32>
    %31 = vector.extract_strided_slice %0 {offsets = [0, 3, 0], sizes = [2, 1, 32], strides = [1, 1, 1]} : vector<2x4x32xf32> to vector<2x1x32xf32>
    %32 = vector.shape_cast %31 : vector<2x1x32xf32> to vector<2x32xf32>
    %c3 = arith.constant 3 : index
    %c0_17 = arith.constant 0 : index
    %c0_18 = arith.constant 0 : index
    %33 = vector.load %arg2[%c3, %c0_17, %c0_18] : memref<4x32x32xf32, #tpu.memory_space<vmem>>, vector<1x32x32xf32>
    %34 = vector.shape_cast %33 : vector<1x32x32xf32> to vector<32x32xf32>
    %cst_19 = arith.constant dense<0.000000e+00> : vector<2x32xf32>
    %35 = tpu.matmul %32, %34, %cst_19 {dimension_numbers = #tpu.dot_dimension_numbers<[1], [0], [0], [1], [0, 0, 1, 1], [], []>} : vector<2x32xf32>, vector<32x32xf32>, vector<2x32xf32> -> vector<2x32xf32>
    %c3_20 = arith.constant 3 : index
    %c0_21 = arith.constant 0 : index
    %36 = vector.load %arg3[%c3_20, %c0_21] : memref<4x32xf32, #tpu.memory_space<vmem>>, vector<1x32xf32>
    %37 = vector.shape_cast %36 : vector<1x32xf32> to vector<32xf32>
    %38 = vector.shape_cast %37 : vector<32xf32> to vector<1x32xf32>
    %39 = vector.broadcast %38 : vector<1x32xf32> to vector<2x32xf32>
    %40 = arith.addf %35, %39 : vector<2x32xf32>
    %c0_22 = arith.constant 0 : index
    %c0_23 = arith.constant 0 : index
    %41 = vector.load %arg1[%c0_22, %c0_23] : memref<32x256xf32, #tpu.memory_space<vmem>>, vector<32x256xf32>
    %42 = vector.extract_strided_slice %10 {offsets = [0, 0], sizes = [1, 32], strides = [1, 1]} : vector<2x32xf32> to vector<1x32xf32>
    %43 = vector.shape_cast %42 : vector<1x32xf32> to vector<32xf32>
    %cst_24 = arith.constant 1.000000e+00 : f32
    %44 = vector.broadcast %cst_24 : f32 to vector<32xf32>
    %45 = arith.addf %44, %43 : vector<32xf32>
    %46 = vector.extract_strided_slice %20 {offsets = [0, 0], sizes = [1, 32], strides = [1, 1]} : vector<2x32xf32> to vector<1x32xf32>
    %47 = vector.shape_cast %46 : vector<1x32xf32> to vector<32xf32>
    %cst_25 = arith.constant 1.000000e+00 : f32
    %48 = vector.broadcast %cst_25 : f32 to vector<32xf32>
    %49 = arith.addf %48, %47 : vector<32xf32>
    %50 = vector.extract_strided_slice %30 {offsets = [0, 0], sizes = [1, 32], strides = [1, 1]} : vector<2x32xf32> to vector<1x32xf32>
    %51 = vector.shape_cast %50 : vector<1x32xf32> to vector<32xf32>
    %cst_26 = arith.constant 1.000000e+00 : f32
    %52 = vector.broadcast %cst_26 : f32 to vector<32xf32>
    %53 = arith.addf %52, %51 : vector<32xf32>
    %54 = vector.extract_strided_slice %40 {offsets = [0, 0], sizes = [1, 32], strides = [1, 1]} : vector<2x32xf32> to vector<1x32xf32>
    %55 = vector.shape_cast %54 : vector<1x32xf32> to vector<32xf32>
    %cst_27 = arith.constant 1.000000e+00 : f32
    %56 = vector.broadcast %cst_27 : f32 to vector<32xf32>
    %57 = arith.addf %56, %55 : vector<32xf32>
    %c0_28 = arith.constant 0 : index
    %c0_29 = arith.constant 0 : index
    %c0_30 = arith.constant 0 : index
    %58 = vector.load %arg4[%c0_28, %c0_29, %c0_30] : memref<4x32x32xf32, #tpu.memory_space<vmem>>, vector<1x32x32xf32>
    %59 = vector.shape_cast %58 : vector<1x32x32xf32> to vector<32x32xf32>
    %60 = vector.shape_cast %45 : vector<32xf32> to vector<1x32xf32>
    %61 = vector.broadcast %60 : vector<1x32xf32> to vector<32x32xf32>
    %62 = arith.mulf %59, %61 : vector<32x32xf32>
    %cst_31 = arith.constant dense<0.000000e+00> : vector<32x256xf32>
    %63 = tpu.matmul %62, %41, %cst_31 {dimension_numbers = #tpu.dot_dimension_numbers<[1], [0], [0], [1], [0, 0, 1, 1], [], []>} : vector<32x32xf32>, vector<32x256xf32>, vector<32x256xf32> -> vector<32x256xf32>
    %c0_32 = arith.constant 0 : index
    %c0_33 = arith.constant 0 : index
    %c0_34 = arith.constant 0 : index
    %64 = vector.load %arg5[%c0_32, %c0_33, %c0_34] : memref<4x32x1xf32, #tpu.memory_space<vmem>>, vector<1x32x1xf32>
    %65 = vector.shape_cast %64 : vector<1x32x1xf32> to vector<32x1xf32>
    %66 = vector.broadcast %65 : vector<32x1xf32> to vector<32x256xf32>
    %67 = arith.addf %63, %66 : vector<32x256xf32>
    %cst_35 = arith.constant 0.000000e+00 : f32
    %68 = vector.broadcast %cst_35 : f32 to vector<32x256xf32>
    %69 = arith.cmpf oge, %67, %68 : vector<32x256xf32>
    %cst_36 = arith.constant 2.000000e-01 : f32
    %70 = vector.broadcast %cst_36 : f32 to vector<32x256xf32>
    %71 = arith.mulf %70, %67 : vector<32x256xf32>
    %72 = arith.select %69, %67, %71 : vector<32x256xi1>, vector<32x256xf32>
    %c1_37 = arith.constant 1 : index
    %c0_38 = arith.constant 0 : index
    %c0_39 = arith.constant 0 : index
    %73 = vector.load %arg4[%c1_37, %c0_38, %c0_39] : memref<4x32x32xf32, #tpu.memory_space<vmem>>, vector<1x32x32xf32>
    %74 = vector.shape_cast %73 : vector<1x32x32xf32> to vector<32x32xf32>
    %75 = vector.shape_cast %49 : vector<32xf32> to vector<1x32xf32>
    %76 = vector.broadcast %75 : vector<1x32xf32> to vector<32x32xf32>
    %77 = arith.mulf %74, %76 : vector<32x32xf32>
    %cst_40 = arith.constant dense<0.000000e+00> : vector<32x256xf32>
    %78 = tpu.matmul %77, %72, %cst_40 {dimension_numbers = #tpu.dot_dimension_numbers<[1], [0], [0], [1], [0, 0, 1, 1], [], []>} : vector<32x32xf32>, vector<32x256xf32>, vector<32x256xf32> -> vector<32x256xf32>
    %c1_41 = arith.constant 1 : index
    %c0_42 = arith.constant 0 : index
    %c0_43 = arith.constant 0 : index
    %79 = vector.load %arg5[%c1_41, %c0_42, %c0_43] : memref<4x32x1xf32, #tpu.memory_space<vmem>>, vector<1x32x1xf32>
    %80 = vector.shape_cast %79 : vector<1x32x1xf32> to vector<32x1xf32>
    %81 = vector.broadcast %80 : vector<32x1xf32> to vector<32x256xf32>
    %82 = arith.addf %78, %81 : vector<32x256xf32>
    %cst_44 = arith.constant 0.000000e+00 : f32
    %83 = vector.broadcast %cst_44 : f32 to vector<32x256xf32>
    %84 = arith.cmpf oge, %82, %83 : vector<32x256xf32>
    %cst_45 = arith.constant 2.000000e-01 : f32
    %85 = vector.broadcast %cst_45 : f32 to vector<32x256xf32>
    %86 = arith.mulf %85, %82 : vector<32x256xf32>
    %87 = arith.select %84, %82, %86 : vector<32x256xi1>, vector<32x256xf32>
    %c2_46 = arith.constant 2 : index
    %c0_47 = arith.constant 0 : index
    %c0_48 = arith.constant 0 : index
    %88 = vector.load %arg4[%c2_46, %c0_47, %c0_48] : memref<4x32x32xf32, #tpu.memory_space<vmem>>, vector<1x32x32xf32>
    %89 = vector.shape_cast %88 : vector<1x32x32xf32> to vector<32x32xf32>
    %90 = vector.shape_cast %53 : vector<32xf32> to vector<1x32xf32>
    %91 = vector.broadcast %90 : vector<1x32xf32> to vector<32x32xf32>
    %92 = arith.mulf %89, %91 : vector<32x32xf32>
    %cst_49 = arith.constant dense<0.000000e+00> : vector<32x256xf32>
    %93 = tpu.matmul %92, %87, %cst_49 {dimension_numbers = #tpu.dot_dimension_numbers<[1], [0], [0], [1], [0, 0, 1, 1], [], []>} : vector<32x32xf32>, vector<32x256xf32>, vector<32x256xf32> -> vector<32x256xf32>
    %c2_50 = arith.constant 2 : index
    %c0_51 = arith.constant 0 : index
    %c0_52 = arith.constant 0 : index
    %94 = vector.load %arg5[%c2_50, %c0_51, %c0_52] : memref<4x32x1xf32, #tpu.memory_space<vmem>>, vector<1x32x1xf32>
    %95 = vector.shape_cast %94 : vector<1x32x1xf32> to vector<32x1xf32>
    %96 = vector.broadcast %95 : vector<32x1xf32> to vector<32x256xf32>
    %97 = arith.addf %93, %96 : vector<32x256xf32>
    %cst_53 = arith.constant 0.000000e+00 : f32
    %98 = vector.broadcast %cst_53 : f32 to vector<32x256xf32>
    %99 = arith.cmpf oge, %97, %98 : vector<32x256xf32>
    %cst_54 = arith.constant 2.000000e-01 : f32
    %100 = vector.broadcast %cst_54 : f32 to vector<32x256xf32>
    %101 = arith.mulf %100, %97 : vector<32x256xf32>
    %102 = arith.select %99, %97, %101 : vector<32x256xi1>, vector<32x256xf32>
    %c3_55 = arith.constant 3 : index
    %c0_56 = arith.constant 0 : index
    %c0_57 = arith.constant 0 : index
    %103 = vector.load %arg4[%c3_55, %c0_56, %c0_57] : memref<4x32x32xf32, #tpu.memory_space<vmem>>, vector<1x32x32xf32>
    %104 = vector.shape_cast %103 : vector<1x32x32xf32> to vector<32x32xf32>
    %105 = vector.shape_cast %57 : vector<32xf32> to vector<1x32xf32>
    %106 = vector.broadcast %105 : vector<1x32xf32> to vector<32x32xf32>
    %107 = arith.mulf %104, %106 : vector<32x32xf32>
    %cst_58 = arith.constant dense<0.000000e+00> : vector<32x256xf32>
    %108 = tpu.matmul %107, %102, %cst_58 {dimension_numbers = #tpu.dot_dimension_numbers<[1], [0], [0], [1], [0, 0, 1, 1], [], []>} : vector<32x32xf32>, vector<32x256xf32>, vector<32x256xf32> -> vector<32x256xf32>
    %c3_59 = arith.constant 3 : index
    %c0_60 = arith.constant 0 : index
    %c0_61 = arith.constant 0 : index
    %109 = vector.load %arg5[%c3_59, %c0_60, %c0_61] : memref<4x32x1xf32, #tpu.memory_space<vmem>>, vector<1x32x1xf32>
    %110 = vector.shape_cast %109 : vector<1x32x1xf32> to vector<32x1xf32>
    %111 = vector.broadcast %110 : vector<32x1xf32> to vector<32x256xf32>
    %112 = arith.addf %108, %111 : vector<32x256xf32>
    %cst_62 = arith.constant 0.000000e+00 : f32
    %113 = vector.broadcast %cst_62 : f32 to vector<32x256xf32>
    %114 = arith.cmpf oge, %112, %113 : vector<32x256xf32>
    %cst_63 = arith.constant 2.000000e-01 : f32
    %115 = vector.broadcast %cst_63 : f32 to vector<32x256xf32>
    %116 = arith.mulf %115, %112 : vector<32x256xf32>
    %117 = arith.select %114, %112, %116 : vector<32x256xi1>, vector<32x256xf32>
    %c0_64 = arith.constant 0 : index
    %c0_65 = arith.constant 0 : index
    %118 = vector.load %arg6[%c0_64, %c0_65] : memref<3x32xf32, #tpu.memory_space<vmem>>, vector<3x32xf32>
    %cst_66 = arith.constant dense<0.000000e+00> : vector<3x256xf32>
    %119 = tpu.matmul %118, %117, %cst_66 {dimension_numbers = #tpu.dot_dimension_numbers<[1], [0], [0], [1], [0, 0, 1, 1], [], []>} : vector<3x32xf32>, vector<32x256xf32>, vector<3x256xf32> -> vector<3x256xf32>
    %c0_67 = arith.constant 0 : index
    %c0_68 = arith.constant 0 : index
    %120 = vector.load %arg7[%c0_67, %c0_68] : memref<3x1xf32, #tpu.memory_space<vmem>>, vector<3x1xf32>
    %121 = vector.broadcast %120 : vector<3x1xf32> to vector<3x256xf32>
    %122 = arith.addf %119, %121 : vector<3x256xf32>
    %c0_69 = arith.constant 0 : index
    %c0_70 = arith.constant 0 : index
    %c0_71 = arith.constant 0 : index
    %123 = vector.load %arg8[%c0_69, %c0_70, %c0_71] : memref<2x3x256xf32, #tpu.memory_space<vmem>>, vector<1x3x256xf32>
    %124 = vector.shape_cast %123 : vector<1x3x256xf32> to vector<3x256xf32>
    %125 = vector.shape_cast %122 : vector<3x256xf32> to vector<1x3x256xf32>
    tpu.vector_store %arg8[%c0_69, %c0_70, %c0_71], %125 {strides = array<i32>} : memref<2x3x256xf32, #tpu.memory_space<vmem>>, vector<1x3x256xf32>,
    %126 = vector.extract_strided_slice %10 {offsets = [1, 0], sizes = [1, 32], strides = [1, 1]} : vector<2x32xf32> to vector<1x32xf32>
    %127 = vector.shape_cast %126 : vector<1x32xf32> to vector<32xf32>
    %cst_72 = arith.constant 1.000000e+00 : f32
    %128 = vector.broadcast %cst_72 : f32 to vector<32xf32>
    %129 = arith.addf %128, %127 : vector<32xf32>
    %130 = vector.extract_strided_slice %20 {offsets = [1, 0], sizes = [1, 32], strides = [1, 1]} : vector<2x32xf32> to vector<1x32xf32>
    %131 = vector.shape_cast %130 : vector<1x32xf32> to vector<32xf32>
    %cst_73 = arith.constant 1.000000e+00 : f32
    %132 = vector.broadcast %cst_73 : f32 to vector<32xf32>
    %133 = arith.addf %132, %131 : vector<32xf32>
    %134 = vector.extract_strided_slice %30 {offsets = [1, 0], sizes = [1, 32], strides = [1, 1]} : vector<2x32xf32> to vector<1x32xf32>
    %135 = vector.shape_cast %134 : vector<1x32xf32> to vector<32xf32>
    %cst_74 = arith.constant 1.000000e+00 : f32
    %136 = vector.broadcast %cst_74 : f32 to vector<32xf32>
    %137 = arith.addf %136, %135 : vector<32xf32>
    %138 = vector.extract_strided_slice %40 {offsets = [1, 0], sizes = [1, 32], strides = [1, 1]} : vector<2x32xf32> to vector<1x32xf32>
    %139 = vector.shape_cast %138 : vector<1x32xf32> to vector<32xf32>
    %cst_75 = arith.constant 1.000000e+00 : f32
    %140 = vector.broadcast %cst_75 : f32 to vector<32xf32>
    %141 = arith.addf %140, %139 : vector<32xf32>
    %c0_76 = arith.constant 0 : index
    %c0_77 = arith.constant 0 : index
    %c0_78 = arith.constant 0 : index
    %142 = vector.load %arg4[%c0_76, %c0_77, %c0_78] : memref<4x32x32xf32, #tpu.memory_space<vmem>>, vector<1x32x32xf32>
    %143 = vector.shape_cast %142 : vector<1x32x32xf32> to vector<32x32xf32>
    %144 = vector.shape_cast %129 : vector<32xf32> to vector<1x32xf32>
    %145 = vector.broadcast %144 : vector<1x32xf32> to vector<32x32xf32>
    %146 = arith.mulf %143, %145 : vector<32x32xf32>
    %cst_79 = arith.constant dense<0.000000e+00> : vector<32x256xf32>
    %147 = tpu.matmul %146, %41, %cst_79 {dimension_numbers = #tpu.dot_dimension_numbers<[1], [0], [0], [1], [0, 0, 1, 1], [], []>} : vector<32x32xf32>, vector<32x256xf32>, vector<32x256xf32> -> vector<32x256xf32>
    %c0_80 = arith.constant 0 : index
    %c0_81 = arith.constant 0 : index
    %c0_82 = arith.constant 0 : index
    %148 = vector.load %arg5[%c0_80, %c0_81, %c0_82] : memref<4x32x1xf32, #tpu.memory_space<vmem>>, vector<1x32x1xf32>
    %149 = vector.shape_cast %148 : vector<1x32x1xf32> to vector<32x1xf32>
    %150 = vector.broadcast %149 : vector<32x1xf32> to vector<32x256xf32>
    %151 = arith.addf %147, %150 : vector<32x256xf32>
    %cst_83 = arith.constant 0.000000e+00 : f32
    %152 = vector.broadcast %cst_83 : f32 to vector<32x256xf32>
    %153 = arith.cmpf oge, %151, %152 : vector<32x256xf32>
    %cst_84 = arith.constant 2.000000e-01 : f32
    %154 = vector.broadcast %cst_84 : f32 to vector<32x256xf32>
    %155 = arith.mulf %154, %151 : vector<32x256xf32>
    %156 = arith.select %153, %151, %155 : vector<32x256xi1>, vector<32x256xf32>
    %c1_85 = arith.constant 1 : index
    %c0_86 = arith.constant 0 : index
    %c0_87 = arith.constant 0 : index
    %157 = vector.load %arg4[%c1_85, %c0_86, %c0_87] : memref<4x32x32xf32, #tpu.memory_space<vmem>>, vector<1x32x32xf32>
    %158 = vector.shape_cast %157 : vector<1x32x32xf32> to vector<32x32xf32>
    %159 = vector.shape_cast %133 : vector<32xf32> to vector<1x32xf32>
    %160 = vector.broadcast %159 : vector<1x32xf32> to vector<32x32xf32>
    %161 = arith.mulf %158, %160 : vector<32x32xf32>
    %cst_88 = arith.constant dense<0.000000e+00> : vector<32x256xf32>
    %162 = tpu.matmul %161, %156, %cst_88 {dimension_numbers = #tpu.dot_dimension_numbers<[1], [0], [0], [1], [0, 0, 1, 1], [], []>} : vector<32x32xf32>, vector<32x256xf32>, vector<32x256xf32> -> vector<32x256xf32>
    %c1_89 = arith.constant 1 : index
    %c0_90 = arith.constant 0 : index
    %c0_91 = arith.constant 0 : index
    %163 = vector.load %arg5[%c1_89, %c0_90, %c0_91] : memref<4x32x1xf32, #tpu.memory_space<vmem>>, vector<1x32x1xf32>
    %164 = vector.shape_cast %163 : vector<1x32x1xf32> to vector<32x1xf32>
    %165 = vector.broadcast %164 : vector<32x1xf32> to vector<32x256xf32>
    %166 = arith.addf %162, %165 : vector<32x256xf32>
    %cst_92 = arith.constant 0.000000e+00 : f32
    %167 = vector.broadcast %cst_92 : f32 to vector<32x256xf32>
    %168 = arith.cmpf oge, %166, %167 : vector<32x256xf32>
    %cst_93 = arith.constant 2.000000e-01 : f32
    %169 = vector.broadcast %cst_93 : f32 to vector<32x256xf32>
    %170 = arith.mulf %169, %166 : vector<32x256xf32>
    %171 = arith.select %168, %166, %170 : vector<32x256xi1>, vector<32x256xf32>
    %c2_94 = arith.constant 2 : index
    %c0_95 = arith.constant 0 : index
    %c0_96 = arith.constant 0 : index
    %172 = vector.load %arg4[%c2_94, %c0_95, %c0_96] : memref<4x32x32xf32, #tpu.memory_space<vmem>>, vector<1x32x32xf32>
    %173 = vector.shape_cast %172 : vector<1x32x32xf32> to vector<32x32xf32>
    %174 = vector.shape_cast %137 : vector<32xf32> to vector<1x32xf32>
    %175 = vector.broadcast %174 : vector<1x32xf32> to vector<32x32xf32>
    %176 = arith.mulf %173, %175 : vector<32x32xf32>
    %cst_97 = arith.constant dense<0.000000e+00> : vector<32x256xf32>
    %177 = tpu.matmul %176, %171, %cst_97 {dimension_numbers = #tpu.dot_dimension_numbers<[1], [0], [0], [1], [0, 0, 1, 1], [], []>} : vector<32x32xf32>, vector<32x256xf32>, vector<32x256xf32> -> vector<32x256xf32>
    %c2_98 = arith.constant 2 : index
    %c0_99 = arith.constant 0 : index
    %c0_100 = arith.constant 0 : index
    %178 = vector.load %arg5[%c2_98, %c0_99, %c0_100] : memref<4x32x1xf32, #tpu.memory_space<vmem>>, vector<1x32x1xf32>
    %179 = vector.shape_cast %178 : vector<1x32x1xf32> to vector<32x1xf32>
    %180 = vector.broadcast %179 : vector<32x1xf32> to vector<32x256xf32>
    %181 = arith.addf %177, %180 : vector<32x256xf32>
    %cst_101 = arith.constant 0.000000e+00 : f32
    %182 = vector.broadcast %cst_101 : f32 to vector<32x256xf32>
    %183 = arith.cmpf oge, %181, %182 : vector<32x256xf32>
    %cst_102 = arith.constant 2.000000e-01 : f32
    %184 = vector.broadcast %cst_102 : f32 to vector<32x256xf32>
    %185 = arith.mulf %184, %181 : vector<32x256xf32>
    %186 = arith.select %183, %181, %185 : vector<32x256xi1>, vector<32x256xf32>
    %c3_103 = arith.constant 3 : index
    %c0_104 = arith.constant 0 : index
    %c0_105 = arith.constant 0 : index
    %187 = vector.load %arg4[%c3_103, %c0_104, %c0_105] : memref<4x32x32xf32, #tpu.memory_space<vmem>>, vector<1x32x32xf32>
    %188 = vector.shape_cast %187 : vector<1x32x32xf32> to vector<32x32xf32>
    %189 = vector.shape_cast %141 : vector<32xf32> to vector<1x32xf32>
    %190 = vector.broadcast %189 : vector<1x32xf32> to vector<32x32xf32>
    %191 = arith.mulf %188, %190 : vector<32x32xf32>
    %cst_106 = arith.constant dense<0.000000e+00> : vector<32x256xf32>
    %192 = tpu.matmul %191, %186, %cst_106 {dimension_numbers = #tpu.dot_dimension_numbers<[1], [0], [0], [1], [0, 0, 1, 1], [], []>} : vector<32x32xf32>, vector<32x256xf32>, vector<32x256xf32> -> vector<32x256xf32>
    %c3_107 = arith.constant 3 : index
    %c0_108 = arith.constant 0 : index
    %c0_109 = arith.constant 0 : index
    %193 = vector.load %arg5[%c3_107, %c0_108, %c0_109] : memref<4x32x1xf32, #tpu.memory_space<vmem>>, vector<1x32x1xf32>
    %194 = vector.shape_cast %193 : vector<1x32x1xf32> to vector<32x1xf32>
    %195 = vector.broadcast %194 : vector<32x1xf32> to vector<32x256xf32>
    %196 = arith.addf %192, %195 : vector<32x256xf32>
    %cst_110 = arith.constant 0.000000e+00 : f32
    %197 = vector.broadcast %cst_110 : f32 to vector<32x256xf32>
    %198 = arith.cmpf oge, %196, %197 : vector<32x256xf32>
    %cst_111 = arith.constant 2.000000e-01 : f32
    %199 = vector.broadcast %cst_111 : f32 to vector<32x256xf32>
    %200 = arith.mulf %199, %196 : vector<32x256xf32>
    %201 = arith.select %198, %196, %200 : vector<32x256xi1>, vector<32x256xf32>
    %c0_112 = arith.constant 0 : index
    %c0_113 = arith.constant 0 : index
    %202 = vector.load %arg6[%c0_112, %c0_113] : memref<3x32xf32, #tpu.memory_space<vmem>>, vector<3x32xf32>
    %cst_114 = arith.constant dense<0.000000e+00> : vector<3x256xf32>
    %203 = tpu.matmul %202, %201, %cst_114 {dimension_numbers = #tpu.dot_dimension_numbers<[1], [0], [0], [1], [0, 0, 1, 1], [], []>} : vector<3x32xf32>, vector<32x256xf32>, vector<3x256xf32> -> vector<3x256xf32>
    %c0_115 = arith.constant 0 : index
    %c0_116 = arith.constant 0 : index
    %204 = vector.load %arg7[%c0_115, %c0_116] : memref<3x1xf32, #tpu.memory_space<vmem>>, vector<3x1xf32>
    %205 = vector.broadcast %204 : vector<3x1xf32> to vector<3x256xf32>
    %206 = arith.addf %203, %205 : vector<3x256xf32>
    %c1_117 = arith.constant 1 : index
    %c0_118 = arith.constant 0 : index
    %c0_119 = arith.constant 0 : index
    %207 = vector.load %arg8[%c1_117, %c0_118, %c0_119] : memref<2x3x256xf32, #tpu.memory_space<vmem>>, vector<1x3x256xf32>
    %208 = vector.shape_cast %207 : vector<1x3x256xf32> to vector<3x256xf32>
    %209 = vector.shape_cast %206 : vector<3x256xf32> to vector<1x3x256xf32>
    tpu.vector_store %arg8[%c1_117, %c0_118, %c0_119], %209 {strides = array<i32>} : memref<2x3x256xf32, #tpu.memory_space<vmem>>, vector<1x3x256xf32>,
    return
  }
}

</mosaic_0001>

<llo_original>
// kernel: tpu_custom_call.1
$region0: #{tpu_custom_call.1}
  #allocation0 [shape = 'u32[]', space=smem, size = 0x4, offset = 0x4, fixed_abs, tag = 'smem constant byte address 0x4 - core index']
  #allocation1 [shape = 'u32[144,128]{1,0:T(1,128)}', space=vmem, size = 0x12000, scoped, tag = 'internal scratch']
  %s0 = inlined_call_operand.vmem [shape: f32[2,4,32], index: 0, kind: input, shape index: {}]
  %s1 = inlined_call_operand.hbm [shape: f32[32,256], index: 1, kind: input, shape index: {}]
  %s2 = inlined_call_operand.vmem [shape: f32[4,32,32], index: 2, kind: input, shape index: {}]
  %s3 = inlined_call_operand.vmem [shape: f32[4,32], index: 3, kind: input, shape index: {}]
  %s4 = inlined_call_operand.hbm [shape: f32[4,32,32], index: 4, kind: input, shape index: {}]
  %s5 = inlined_call_operand.vmem [shape: f32[4,32,1], index: 5, kind: input, shape index: {}]
  %s6 = inlined_call_operand.vmem [shape: f32[3,32], index: 6, kind: input, shape index: {}]
  %s7 = inlined_call_operand.vmem [shape: f32[3,1], index: 7, kind: input, shape index: {}]
  %s8 = inlined_call_operand.vmem [shape: f32[2,3,256], index: 8, kind: output, shape index: {}]
  %s9 = sld [smem:[#allocation0]]
  $region50: #{tpu_custom_call.1} parent=0
    _
  %s11 = ssub.s32 1, %s9
  %s12 = scalar_select 0, %s11, %s9
  $region1: #{tpu_custom_call.1} parent=0
    #allocation2 [shape = 'u8[32768]{0}', space=vmem, size = 0x8000, scoped, tag = 'input window, operand 1, single buffered']
    #allocation3 [shape = 's32[1]{0}', space=sflag, size = 0x4, scoped, tag = 'scoped memory for tpu_custom_call.1']
    #allocation4 [shape = 'u8[65536]{0}', space=vmem, size = 0x10000, scoped, tag = 'input window, operand 4, single buffered']
    #allocation5 [shape = 's32[1]{0}', space=sflag, size = 0x4, scoped, tag = 'scoped memory for tpu_custom_call.1']
    %13 = vsyncpa [#allocation3], 0
    %14 = vsyncpa [#allocation5], 0
    // Predicated region
    $region2: #{tpu_custom_call.1} parent=1 // pred_check
      _
    $region3: #{tpu_custom_call.1} parent=1 // pred_check_branch
      %16 = sbr.rel (0) target = $region5
    $region4: #{tpu_custom_call.1} parent=1 // pred_region
      _
    $region5: #{tpu_custom_call.1} parent=1 // pred_fallthru
      _
    // Predicated region
    $region6: #{tpu_custom_call.1} parent=1 // pred_check
      _
    $region7: #{tpu_custom_call.1} parent=1 // pred_check_branch
      %18 = sbr.rel (0) target = $region9
    $region8: #{tpu_custom_call.1} parent=1 // pred_region
      %s20 = ssub.s32 1024, 1024
      %21 = vsyncadd [#allocation3], %s20
      %s22 = sshll.u32 [#allocation2], 4
      %s23 = int_to_ptr.vmem [resolvable:$true] %s22
      %28 = dma.hbm_to_vmem [thread:$0]  %s1, 1024, %s23, [#allocation3], 256, 256, 16
    $region9: #{tpu_custom_call.1} parent=1 // pred_fallthru
      _
    // Predicated region
    $region10: #{tpu_custom_call.1} parent=1 // pred_check
      _
    $region11: #{tpu_custom_call.1} parent=1 // pred_check_branch
      %30 = sbr.rel (0) target = $region13
    $region12: #{tpu_custom_call.1} parent=1 // pred_region
      _
    $region13: #{tpu_custom_call.1} parent=1 // pred_fallthru
      _
    // Predicated region
    $region14: #{tpu_custom_call.1} parent=1 // pred_check
      _
    $region15: #{tpu_custom_call.1} parent=1 // pred_check_branch
      %32 = sbr.rel (0) target = $region17
    $region16: #{tpu_custom_call.1} parent=1 // pred_region
      _
    $region17: #{tpu_custom_call.1} parent=1 // pred_fallthru
      _
    // Predicated region
    $region18: #{tpu_custom_call.1} parent=1 // pred_check
      _
    $region19: #{tpu_custom_call.1} parent=1 // pred_check_branch
      %34 = sbr.rel (0) target = $region21
    $region20: #{tpu_custom_call.1} parent=1 // pred_region
      %s36 = ssub.s32 2048, 2048
      %37 = vsyncadd [#allocation5], %s36
      %s38 = sshll.u32 [#allocation4], 4
      %s39 = int_to_ptr.vmem [resolvable:$true] %s38
      %44 = dma.hbm_to_vmem [thread:$0]  %s4, 2048, %s39, [#allocation5], 128, 128, 8
    $region21: #{tpu_custom_call.1} parent=1 // pred_fallthru
      _
    // Predicated region
    $region22: #{tpu_custom_call.1} parent=1 // pred_check
      _
    $region23: #{tpu_custom_call.1} parent=1 // pred_check_branch
      %46 = sbr.rel (0) target = $region25
    $region24: #{tpu_custom_call.1} parent=1 // pred_region
      _
    $region25: #{tpu_custom_call.1} parent=1 // pred_fallthru
      _
    // Predicated region
    $region26: #{tpu_custom_call.1} parent=1 // pred_check
      _
    $region27: #{tpu_custom_call.1} parent=1 // pred_check_branch
      %48 = sbr.rel (0) target = $region29
    $region28: #{tpu_custom_call.1} parent=1 // pred_region
      _
    $region29: #{tpu_custom_call.1} parent=1 // pred_fallthru
      _
    // Predicated region
    $region30: #{tpu_custom_call.1} parent=1 // pred_check
      _
    $region31: #{tpu_custom_call.1} parent=1 // pred_check_branch
      %50 = sbr.rel (0) target = $region33
    $region32: #{tpu_custom_call.1} parent=1 // pred_region
      _
    $region33: #{tpu_custom_call.1} parent=1 // pred_fallthru
      _
    // Predicated region
    $region34: #{tpu_custom_call.1} parent=1 // pred_check
      _
    $region35: #{tpu_custom_call.1} parent=1 // pred_check_branch
      %52 = sbr.rel (0) target = $region37
    $region36: #{tpu_custom_call.1} parent=1 // pred_region
      %53 = dma.done [#allocation3], 1024
    $region37: #{tpu_custom_call.1} parent=1 // pred_fallthru
      _
    // Predicated region
    $region38: #{tpu_custom_call.1} parent=1 // pred_check
      _
    $region39: #{tpu_custom_call.1} parent=1 // pred_check_branch
      %55 = sbr.rel (0) target = $region41
    $region40: #{tpu_custom_call.1} parent=1 // pred_region
      %56 = dma.done [#allocation5], 2048
    $region41: #{tpu_custom_call.1} parent=1 // pred_fallthru
      _
    %v57 = vld [vmem:[%s0] sm:$0xf]
    %v58 = vld [vmem:[%s0 + $0x4] sm:$0xf]
    %v59 = vld [vmem:[%s2] sm:$0xff]
    %v60 = vld [vmem:[%s2 + $0x8] sm:$0xff]
    %v61 = vld [vmem:[%s2 + $0x10] sm:$0xff]
    %v62 = vld [vmem:[%s2 + $0x18] sm:$0xff]
    %v63 = vld [vmem:[%s3] sm:$0x1]
    %v64 = vlaneseq
    %v65 = vshrl.u32 %v64, 7
    %v66 = vsub.s32 0, %v65
    %v67 = vrot.slane %v63, %v66
    %v70 = vrot.slane %v58, 7
    %vm71 = vcmask 1041409
    %v72 = vsel %vm71, %v70, %v57
    %vm73 = vcmask 261120
    %v74 = vsel %vm73, %v72, 0
    %76 = vmatprep.subr.mxu0 0.0
    %77 = vmatpush1.msra.mxu0 %v59
    %78 = vmatprep.subr.mxu0 0.0
    %79 = vmatpush1.msra.mxu0 %v60
    %80 = vmatprep.subr.mxu0 0.0
    %81 = vmatpush1.msra.mxu0 %v61
    %82 = vmatprep.subr.mxu0 0.0
    %83 = vmatpush1.msra.mxu0 %v62
    %84 = vmatprep.subr.mxu0 0.0
    %85 = vmatpush1.msra.mxu0 0.0
    %86 = vmatprep.subr.mxu0 0.0
    %87 = vmatpush1.msra.mxu0 0.0
    %88 = vmatprep.subr.mxu0 0.0
    %89 = vmatpush1.msra.mxu0 0.0
    %90 = vmatprep.subr.mxu0 0.0
    %91 = vmatpush1.msra.mxu0 0.0
    %92 = vmatprep.subr.mxu0 0.0
    %93 = vmatpush1.msra.mxu0 0.0
    %94 = vmatprep.subr.mxu0 0.0
    %95 = vmatpush1.msra.mxu0 0.0
    %96 = vmatprep.subr.mxu0 0.0
    %97 = vmatpush1.msra.mxu0 0.0
    %98 = vmatprep.subr.mxu0 0.0
    %99 = vmatpush1.msra.mxu0 0.0
    %100 = vmatprep.subr.mxu0 0.0
    %101 = vmatpush1.msra.mxu0 0.0
    %102 = vmatprep.subr.mxu0 0.0
    %103 = vmatpush1.msra.mxu0 0.0
    %104 = vmatprep.subr.mxu0 0.0
    %105 = vmatpush1.msra.mxu0 0.0
    %106 = vmatprep.subr.mxu0 0.0
    %107 = vmatpush1.msra.mxu0 0.0
    %108 = vmatprep.subr.mxu0 0.0
    %109 = vmatpush1.msra.mxu0 0.0
    %110 = vmatprep.subr.mxu0 0.0
    %111 = vmatpush1.msra.mxu0 0.0
    %112 = vmatprep.subr.mxu0 0.0
    %113 = vmatpush1.msra.mxu0 0.0
    %114 = vmatprep.subr.mxu0 0.0
    %115 = vmatpush1.msra.mxu0 0.0
    %116 = vmatprep.subr.mxu0 0.0
    %117 = vmatpush1.msra.mxu0 0.0
    %118 = vmatprep.subr.mxu0 0.0
    %119 = vmatpush1.msra.mxu0 0.0
    %120 = vmatprep.subr.mxu0 0.0
    %121 = vmatpush1.msra.mxu0 0.0
    %122 = vmatprep.subr.mxu0 0.0
    %123 = vmatpush1.msra.mxu0 0.0
    %124 = vmatprep.subr.mxu0 0.0
    %125 = vmatpush1.msra.mxu0 0.0
    %126 = vmatprep.subr.mxu0 0.0
    %127 = vmatpush1.msra.mxu0 0.0
    %128 = vmatprep.subr.mxu0 0.0
    %129 = vmatpush1.msra.mxu0 0.0
    %130 = vmatprep.subr.mxu0 0.0
    %131 = vmatpush1.msra.mxu0 0.0
    %132 = vmatprep.subr.mxu0 0.0
    %133 = vmatpush1.msra.mxu0 0.0
    %134 = vmatprep.subr.mxu0 0.0
    %135 = vmatpush1.msra.mxu0 0.0
    %136 = vmatprep.subr.mxu0 0.0
    %137 = vmatpush1.msra.mxu0 0.0
    %138 = vmatprep.subr.mxu0 0.0
    %139 = vmatpush1.msra.mxu0 0.0
    %140 = vmatprep.mubr.f32.mxu0 0.0
    %141 = vmatmul.mubr.f32.gmra.mrb[0].mxu0 %v74
    %v142 = vpop.f32.mrb[0].mxu0
    %v143 = vadd.f32 %v67, %v142
    %v144 = vpop.f32.mrb[0].mxu0
    %145 = vdwg.mxu0
    %s146 = scalar_lea.vmem %s2, 32
    %v147 = vld [vmem:[%s146] sm:$0xff]
    %v148 = vld [vmem:[%s146 + $0x8] sm:$0xff]
    %v149 = vld [vmem:[%s146 + $0x10] sm:$0xff]
    %v150 = vld [vmem:[%s146 + $0x18] sm:$0xff]
    %v151 = vld [vmem:[%s3 + $0x1] sm:$0x1]
    %v152 = vlaneseq
    %v153 = vshrl.u32 %v152, 7
    %v154 = vsub.s32 0, %v153
    %v155 = vrot.slane %v151, %v154
    %v156 = vrot.slane %v57, 1
    %v157 = vsel %vm71, %v58, %v156
    %v158 = vsel %vm73, %v157, 0
    %160 = vmatprep.subr.mxu0 0.0
    %161 = vmatpush1.msra.mxu0 %v147
    %162 = vmatprep.subr.mxu0 0.0
    %163 = vmatpush1.msra.mxu0 %v148
    %164 = vmatprep.subr.mxu0 0.0
    %165 = vmatpush1.msra.mxu0 %v149
    %166 = vmatprep.subr.mxu0 0.0
    %167 = vmatpush1.msra.mxu0 %v150
    %168 = vmatprep.subr.mxu0 0.0
    %169 = vmatpush1.msra.mxu0 0.0
    %170 = vmatprep.subr.mxu0 0.0
    %171 = vmatpush1.msra.mxu0 0.0
    %172 = vmatprep.subr.mxu0 0.0
    %173 = vmatpush1.msra.mxu0 0.0
    %174 = vmatprep.subr.mxu0 0.0
    %175 = vmatpush1.msra.mxu0 0.0
    %176 = vmatprep.subr.mxu0 0.0
    %177 = vmatpush1.msra.mxu0 0.0
    %178 = vmatprep.subr.mxu0 0.0
    %179 = vmatpush1.msra.mxu0 0.0
    %180 = vmatprep.subr.mxu0 0.0
    %181 = vmatpush1.msra.mxu0 0.0
    %182 = vmatprep.subr.mxu0 0.0
    %183 = vmatpush1.msra.mxu0 0.0
    %184 = vmatprep.subr.mxu0 0.0
    %185 = vmatpush1.msra.mxu0 0.0
    %186 = vmatprep.subr.mxu0 0.0
    %187 = vmatpush1.msra.mxu0 0.0
    %188 = vmatprep.subr.mxu0 0.0
    %189 = vmatpush1.msra.mxu0 0.0
    %190 = vmatprep.subr.mxu0 0.0
    %191 = vmatpush1.msra.mxu0 0.0
    %192 = vmatprep.subr.mxu0 0.0
    %193 = vmatpush1.msra.mxu0 0.0
    %194 = vmatprep.subr.mxu0 0.0
    %195 = vmatpush1.msra.mxu0 0.0
    %196 = vmatprep.subr.mxu0 0.0
    %197 = vmatpush1.msra.mxu0 0.0
    %198 = vmatprep.subr.mxu0 0.0
    %199 = vmatpush1.msra.mxu0 0.0
    %200 = vmatprep.subr.mxu0 0.0
    %201 = vmatpush1.msra.mxu0 0.0
    %202 = vmatprep.subr.mxu0 0.0
    %203 = vmatpush1.msra.mxu0 0.0
    %204 = vmatprep.subr.mxu0 0.0
    %205 = vmatpush1.msra.mxu0 0.0
    %206 = vmatprep.subr.mxu0 0.0
    %207 = vmatpush1.msra.mxu0 0.0
    %208 = vmatprep.subr.mxu0 0.0
    %209 = vmatpush1.msra.mxu0 0.0
    %210 = vmatprep.subr.mxu0 0.0
    %211 = vmatpush1.msra.mxu0 0.0
    %212 = vmatprep.subr.mxu0 0.0
    %213 = vmatpush1.msra.mxu0 0.0
    %214 = vmatprep.subr.mxu0 0.0
    %215 = vmatpush1.msra.mxu0 0.0
    %216 = vmatprep.subr.mxu0 0.0
    %217 = vmatpush1.msra.mxu0 0.0
    %218 = vmatprep.subr.mxu0 0.0
    %219 = vmatpush1.msra.mxu0 0.0
    %220 = vmatprep.subr.mxu0 0.0
    %221 = vmatpush1.msra.mxu0 0.0
    %222 = vmatprep.subr.mxu0 0.0
    %223 = vmatpush1.msra.mxu0 0.0
    %224 = vmatprep.mubr.f32.mxu0 0.0
    %225 = vmatmul.mubr.f32.gmra.mrb[0].mxu0 %v158
    %v226 = vpop.f32.mrb[0].mxu0
    %v227 = vadd.f32 %v155, %v226
    %v228 = vpop.f32.mrb[0].mxu0
    %229 = vdwg.mxu0
    %s230 = scalar_lea.vmem %s2, 64
    %v231 = vld [vmem:[%s230] sm:$0xff]
    %v232 = vld [vmem:[%s230 + $0x8] sm:$0xff]
    %v233 = vld [vmem:[%s230 + $0x10] sm:$0xff]
    %v234 = vld [vmem:[%s230 + $0x18] sm:$0xff]
    %v235 = vld [vmem:[%s3 + $0x2] sm:$0x1]
    %v236 = vlaneseq
    %v237 = vshrl.u32 %v236, 7
    %v238 = vsub.s32 0, %v237
    %v239 = vrot.slane %v235, %v238
    %v240 = vrot.slane %v57, 2
    %v241 = vrot.slane %v58, 1
    %v242 = vsel %vm71, %v241, %v240
    %v243 = vsel %vm73, %v242, 0
    %245 = vmatprep.subr.mxu0 0.0
    %246 = vmatpush1.msra.mxu0 %v231
    %247 = vmatprep.subr.mxu0 0.0
    %248 = vmatpush1.msra.mxu0 %v232
    %249 = vmatprep.subr.mxu0 0.0
    %250 = vmatpush1.msra.mxu0 %v233
    %251 = vmatprep.subr.mxu0 0.0
    %252 = vmatpush1.msra.mxu0 %v234
    %253 = vmatprep.subr.mxu0 0.0
    %254 = vmatpush1.msra.mxu0 0.0
    %255 = vmatprep.subr.mxu0 0.0
    %256 = vmatpush1.msra.mxu0 0.0
    %257 = vmatprep.subr.mxu0 0.0
    %258 = vmatpush1.msra.mxu0 0.0
    %259 = vmatprep.subr.mxu0 0.0
    %260 = vmatpush1.msra.mxu0 0.0
    %261 = vmatprep.subr.mxu0 0.0
    %262 = vmatpush1.msra.mxu0 0.0
    %263 = vmatprep.subr.mxu0 0.0
    %264 = vmatpush1.msra.mxu0 0.0
    %265 = vmatprep.subr.mxu0 0.0
    %266 = vmatpush1.msra.mxu0 0.0
    %267 = vmatprep.subr.mxu0 0.0
    %268 = vmatpush1.msra.mxu0 0.0
    %269 = vmatprep.subr.mxu0 0.0
    %270 = vmatpush1.msra.mxu0 0.0
    %271 = vmatprep.subr.mxu0 0.0
    %272 = vmatpush1.msra.mxu0 0.0
    %273 = vmatprep.subr.mxu0 0.0
    %274 = vmatpush1.msra.mxu0 0.0
    %275 = vmatprep.subr.mxu0 0.0
    %276 = vmatpush1.msra.mxu0 0.0
    %277 = vmatprep.subr.mxu0 0.0
    %278 = vmatpush1.msra.mxu0 0.0
    %279 = vmatprep.subr.mxu0 0.0
    %280 = vmatpush1.msra.mxu0 0.0
    %281 = vmatprep.subr.mxu0 0.0
    %282 = vmatpush1.msra.mxu0 0.0
    %283 = vmatprep.subr.mxu0 0.0
    %284 = vmatpush1.msra.mxu0 0.0
    %285 = vmatprep.subr.mxu0 0.0
    %286 = vmatpush1.msra.mxu0 0.0
    %287 = vmatprep.subr.mxu0 0.0
    %288 = vmatpush1.msra.mxu0 0.0
    %289 = vmatprep.subr.mxu0 0.0
    %290 = vmatpush1.msra.mxu0 0.0
    %291 = vmatprep.subr.mxu0 0.0
    %292 = vmatpush1.msra.mxu0 0.0
    %293 = vmatprep.subr.mxu0 0.0
    %294 = vmatpush1.msra.mxu0 0.0
    %295 = vmatprep.subr.mxu0 0.0
    %296 = vmatpush1.msra.mxu0 0.0
    %297 = vmatprep.subr.mxu0 0.0
    %298 = vmatpush1.msra.mxu0 0.0
    %299 = vmatprep.subr.mxu0 0.0
    %300 = vmatpush1.msra.mxu0 0.0
    %301 = vmatprep.subr.mxu0 0.0
    %302 = vmatpush1.msra.mxu0 0.0
    %303 = vmatprep.subr.mxu0 0.0
    %304 = vmatpush1.msra.mxu0 0.0
    %305 = vmatprep.subr.mxu0 0.0
    %306 = vmatpush1.msra.mxu0 0.0
    %307 = vmatprep.subr.mxu0 0.0
    %308 = vmatpush1.msra.mxu0 0.0
    %309 = vmatprep.mubr.f32.mxu0 0.0
    %310 = vmatmul.mubr.f32.gmra.mrb[0].mxu0 %v243
    %v311 = vpop.f32.mrb[0].mxu0
    %v312 = vadd.f32 %v239, %v311
    %v313 = vpop.f32.mrb[0].mxu0
    %314 = vdwg.mxu0
    %s315 = scalar_lea.vmem %s2, 96
    %v316 = vld [vmem:[%s315] sm:$0xff]
    %v317 = vld [vmem:[%s315 + $0x8] sm:$0xff]
    %v318 = vld [vmem:[%s315 + $0x10] sm:$0xff]
    %v319 = vld [vmem:[%s315 + $0x18] sm:$0xff]
    %v320 = vld [vmem:[%s3 + $0x3] sm:$0x1]
    %v321 = vlaneseq
    %v322 = vshrl.u32 %v321, 7
    %v323 = vsub.s32 0, %v322
    %v324 = vrot.slane %v320, %v323
    %v325 = vrot.slane %v57, 3
    %v326 = vrot.slane %v58, 2
    %v327 = vsel %vm71, %v326, %v325
    %v328 = vsel %vm73, %v327, 0
    %330 = vmatprep.subr.mxu0 0.0
    %331 = vmatpush1.msra.mxu0 %v316
    %332 = vmatprep.subr.mxu0 0.0
    %333 = vmatpush1.msra.mxu0 %v317
    %334 = vmatprep.subr.mxu0 0.0
    %335 = vmatpush1.msra.mxu0 %v318
    %336 = vmatprep.subr.mxu0 0.0
    %337 = vmatpush1.msra.mxu0 %v319
    %338 = vmatprep.subr.mxu0 0.0
    %339 = vmatpush1.msra.mxu0 0.0
    %340 = vmatprep.subr.mxu0 0.0
    %341 = vmatpush1.msra.mxu0 0.0
    %342 = vmatprep.subr.mxu0 0.0
    %343 = vmatpush1.msra.mxu0 0.0
    %344 = vmatprep.subr.mxu0 0.0
    %345 = vmatpush1.msra.mxu0 0.0
    %346 = vmatprep.subr.mxu0 0.0
    %347 = vmatpush1.msra.mxu0 0.0
    %348 = vmatprep.subr.mxu0 0.0
    %349 = vmatpush1.msra.mxu0 0.0
    %350 = vmatprep.subr.mxu0 0.0
    %351 = vmatpush1.msra.mxu0 0.0
    %352 = vmatprep.subr.mxu0 0.0
    %353 = vmatpush1.msra.mxu0 0.0
    %354 = vmatprep.subr.mxu0 0.0
    %355 = vmatpush1.msra.mxu0 0.0
    %356 = vmatprep.subr.mxu0 0.0
    %357 = vmatpush1.msra.mxu0 0.0
    %358 = vmatprep.subr.mxu0 0.0
    %359 = vmatpush1.msra.mxu0 0.0
    %360 = vmatprep.subr.mxu0 0.0
    %361 = vmatpush1.msra.mxu0 0.0
    %362 = vmatprep.subr.mxu0 0.0
    %363 = vmatpush1.msra.mxu0 0.0
    %364 = vmatprep.subr.mxu0 0.0
    %365 = vmatpush1.msra.mxu0 0.0
    %366 = vmatprep.subr.mxu0 0.0
    %367 = vmatpush1.msra.mxu0 0.0
    %368 = vmatprep.subr.mxu0 0.0
    %369 = vmatpush1.msra.mxu0 0.0
    %370 = vmatprep.subr.mxu0 0.0
    %371 = vmatpush1.msra.mxu0 0.0
    %372 = vmatprep.subr.mxu0 0.0
    %373 = vmatpush1.msra.mxu0 0.0
    %374 = vmatprep.subr.mxu0 0.0
    %375 = vmatpush1.msra.mxu0 0.0
    %376 = vmatprep.subr.mxu0 0.0
    %377 = vmatpush1.msra.mxu0 0.0
    %378 = vmatprep.subr.mxu0 0.0
    %379 = vmatpush1.msra.mxu0 0.0
    %380 = vmatprep.subr.mxu0 0.0
    %381 = vmatpush1.msra.mxu0 0.0
    %382 = vmatprep.subr.mxu0 0.0
    %383 = vmatpush1.msra.mxu0 0.0
    %384 = vmatprep.subr.mxu0 0.0
    %385 = vmatpush1.msra.mxu0 0.0
    %386 = vmatprep.subr.mxu0 0.0
    %387 = vmatpush1.msra.mxu0 0.0
    %388 = vmatprep.subr.mxu0 0.0
    %389 = vmatpush1.msra.mxu0 0.0
    %390 = vmatprep.subr.mxu0 0.0
    %391 = vmatpush1.msra.mxu0 0.0
    %392 = vmatprep.subr.mxu0 0.0
    %393 = vmatpush1.msra.mxu0 0.0
    %394 = vmatprep.mubr.f32.mxu0 0.0
    %395 = vmatmul.mubr.f32.gmra.mrb[0].mxu0 %v328
    %v396 = vpop.f32.mrb[0].mxu0
    %v397 = vadd.f32 %v324, %v396
    %v398 = vpop.f32.mrb[0].mxu0
    %399 = vdwg.mxu0
    %v400 = vld [vmem:[#allocation2] sm:$0xff]
    %v401 = vld [vmem:[#allocation2 + $0x8] sm:$0xff]
    %v402 = vld [vmem:[#allocation2 + $0x10] sm:$0xff]
    %v403 = vld [vmem:[#allocation2 + $0x18] sm:$0xff]
    %v404 = vld [vmem:[#allocation2 + $0x20] sm:$0xff]
    %v405 = vld [vmem:[#allocation2 + $0x28] sm:$0xff]
    %v406 = vld [vmem:[#allocation2 + $0x30] sm:$0xff]
    %v407 = vld [vmem:[#allocation2 + $0x38] sm:$0xff]
    %v408 = vadd.f32 %v143, 1.0
    %v409 = vadd.f32 %v227, 1.0
    %v410 = vadd.f32 %v312, 1.0
    %v411 = vadd.f32 %v397, 1.0
    %v412 = vld [vmem:[#allocation4] sm:$0xff]
    %v413 = vld [vmem:[#allocation4 + $0x8] sm:$0xff]
    %v414 = vld [vmem:[#allocation4 + $0x10] sm:$0xff]
    %v415 = vld [vmem:[#allocation4 + $0x18] sm:$0xff]
    %v416 = vlaneseq
    %v417 = vshrl.u32 %v416, 7
    %v418 = vsub.s32 0, %v417
    %v419 = vrot.slane %v408, %v418
    %v420 = vmul.f32 %v412, %v419
    %v421 = vmul.f32 %v413, %v419
    %v422 = vmul.f32 %v414, %v419
    %v423 = vmul.f32 %v415, %v419
    %v424 = vld [vmem:[%s5] sm:$0xff]
    %v425 = vld [vmem:[%s5 + $0x8] sm:$0xff]
    %v426 = vld [vmem:[%s5 + $0x10] sm:$0xff]
    %v427 = vld [vmem:[%s5 + $0x18] sm:$0xff]
    %429 = vset.pattern.permute.xlu0 0
    %430 = vperm.xlu0 %429, %v424
    %v431 = vpop.permute.xlu0 %430
    %434 = vset.pattern.permute.xlu0 0
    %435 = vperm.xlu0 %434, %v425
    %v436 = vpop.permute.xlu0 %435
    %439 = vset.pattern.permute.xlu0 0
    %440 = vperm.xlu0 %439, %v426
    %v441 = vpop.permute.xlu0 %440
    %444 = vset.pattern.permute.xlu0 0
    %445 = vperm.xlu0 %444, %v427
    %v446 = vpop.permute.xlu0 %445
    %v449 = vsel %vm73, %v420, 0
    %v452 = vsel %vm73, %v421, 0
    %v455 = vsel %vm73, %v422, 0
    %v458 = vsel %vm73, %v423, 0
    %460 = vmatprep.subr.mxu0 %v401
    %461 = vmatpush1.msra.mxu0 %v400
    %462 = vmatprep.subr.mxu0 %v403
    %463 = vmatpush1.msra.mxu0 %v402
    %464 = vmatprep.subr.mxu0 %v405
    %465 = vmatpush1.msra.mxu0 %v404
    %466 = vmatprep.subr.mxu0 %v407
    %467 = vmatpush1.msra.mxu0 %v406
    %468 = vmatprep.subr.mxu0 0.0
    %469 = vmatpush1.msra.mxu0 0.0
    %470 = vmatprep.subr.mxu0 0.0
    %471 = vmatpush1.msra.mxu0 0.0
    %472 = vmatprep.subr.mxu0 0.0
    %473 = vmatpush1.msra.mxu0 0.0
    %474 = vmatprep.subr.mxu0 0.0
    %475 = vmatpush1.msra.mxu0 0.0
    %476 = vmatprep.subr.mxu0 0.0
    %477 = vmatpush1.msra.mxu0 0.0
    %478 = vmatprep.subr.mxu0 0.0
    %479 = vmatpush1.msra.mxu0 0.0
    %480 = vmatprep.subr.mxu0 0.0
    %481 = vmatpush1.msra.mxu0 0.0
    %482 = vmatprep.subr.mxu0 0.0
    %483 = vmatpush1.msra.mxu0 0.0
    %484 = vmatprep.subr.mxu0 0.0
    %485 = vmatpush1.msra.mxu0 0.0
    %486 = vmatprep.subr.mxu0 0.0
    %487 = vmatpush1.msra.mxu0 0.0
    %488 = vmatprep.subr.mxu0 0.0
    %489 = vmatpush1.msra.mxu0 0.0
    %490 = vmatprep.subr.mxu0 0.0
    %491 = vmatpush1.msra.mxu0 0.0
    %492 = vmatprep.subr.mxu0 0.0
    %493 = vmatpush1.msra.mxu0 0.0
    %494 = vmatprep.subr.mxu0 0.0
    %495 = vmatpush1.msra.mxu0 0.0
    %496 = vmatprep.subr.mxu0 0.0
    %497 = vmatpush1.msra.mxu0 0.0
    %498 = vmatprep.subr.mxu0 0.0
    %499 = vmatpush1.msra.mxu0 0.0
    %500 = vmatprep.subr.mxu0 0.0
    %501 = vmatpush1.msra.mxu0 0.0
    %502 = vmatprep.subr.mxu0 0.0
    %503 = vmatpush1.msra.mxu0 0.0
    %504 = vmatprep.subr.mxu0 0.0
    %505 = vmatpush1.msra.mxu0 0.0
    %506 = vmatprep.subr.mxu0 0.0
    %507 = vmatpush1.msra.mxu0 0.0
    %508 = vmatprep.subr.mxu0 0.0
    %509 = vmatpush1.msra.mxu0 0.0
    %510 = vmatprep.subr.mxu0 0.0
    %511 = vmatpush1.msra.mxu0 0.0
    %512 = vmatprep.subr.mxu0 0.0
    %513 = vmatpush1.msra.mxu0 0.0
    %514 = vmatprep.subr.mxu0 0.0
    %515 = vmatpush1.msra.mxu0 0.0
    %516 = vmatprep.subr.mxu0 0.0
    %517 = vmatpush1.msra.mxu0 0.0
    %518 = vmatprep.subr.mxu0 0.0
    %519 = vmatpush1.msra.mxu0 0.0
    %520 = vmatprep.subr.mxu0 0.0
    %521 = vmatpush1.msra.mxu0 0.0
    %522 = vmatprep.subr.mxu0 0.0
    %523 = vmatpush1.msra.mxu0 0.0
    %524 = vmatprep.mubr.f32.mxu0 0.0
    %525 = vmatmul.mubr.f32.gmra.mrb[0].mxu0 %v449
    %v526 = vpop.f32.mrb[0].mxu0
    %v527 = vadd.f32 %v431, %v526
    %v528 = vpop.f32.mrb[0].mxu0
    %v529 = vadd.f32 %v431, %v528
    %530 = vmatprep.mubr.f32.mxu0 0.0
    %531 = vmatmul.mubr.f32.gmra.mrb[0].mxu0 %v452
    %v532 = vpop.f32.mrb[0].mxu0
    %v533 = vadd.f32 %v436, %v532
    %v534 = vpop.f32.mrb[0].mxu0
    %v535 = vadd.f32 %v436, %v534
    %536 = vmatprep.mubr.f32.mxu0 0.0
    %537 = vmatmul.mubr.f32.gmra.mrb[0].mxu0 %v455
    %v538 = vpop.f32.mrb[0].mxu0
    %v539 = vadd.f32 %v441, %v538
    %v540 = vpop.f32.mrb[0].mxu0
    %v541 = vadd.f32 %v441, %v540
    %542 = vmatprep.mubr.f32.mxu0 0.0
    %543 = vmatmul.mubr.f32.gmra.mrb[0].mxu0 %v458
    %v544 = vpop.f32.mrb[0].mxu0
    %v545 = vadd.f32 %v446, %v544
    %v546 = vpop.f32.mrb[0].mxu0
    %v547 = vadd.f32 %v446, %v546
    %548 = vdwg.mxu0
    %vm549 = vcmp.ge.f32.partialorder %v527, 0.0
    %vm550 = vcmp.ge.f32.partialorder %v529, 0.0
    %vm551 = vcmp.ge.f32.partialorder %v533, 0.0
    %vm552 = vcmp.ge.f32.partialorder %v535, 0.0
    %vm553 = vcmp.ge.f32.partialorder %v539, 0.0
    %vm554 = vcmp.ge.f32.partialorder %v541, 0.0
    %vm555 = vcmp.ge.f32.partialorder %v545, 0.0
    %vm556 = vcmp.ge.f32.partialorder %v547, 0.0
    %v557 = vmul.f32 %v527, 0.2
    %v558 = vmul.f32 %v529, 0.2
    %v559 = vmul.f32 %v533, 0.2
    %v560 = vmul.f32 %v535, 0.2
    %v561 = vmul.f32 %v539, 0.2
    %v562 = vmul.f32 %v541, 0.2
    %v563 = vmul.f32 %v545, 0.2
    %v564 = vmul.f32 %v547, 0.2
    %v565 = vsel %vm549, %v527, %v557
    %v566 = vsel %vm550, %v529, %v558
    %v567 = vsel %vm551, %v533, %v559
    %v568 = vsel %vm552, %v535, %v560
    %v569 = vsel %vm553, %v539, %v561
    %v570 = vsel %vm554, %v541, %v562
    %v571 = vsel %vm555, %v545, %v563
    %v572 = vsel %vm556, %v547, %v564
    %s573 = scalar_lea.vmem [#allocation4], 32
    %v574 = vld [vmem:[%s573] sm:$0xff]
    %v575 = vld [vmem:[%s573 + $0x8] sm:$0xff]
    %v576 = vld [vmem:[%s573 + $0x10] sm:$0xff]
    %v577 = vld [vmem:[%s573 + $0x18] sm:$0xff]
    %v578 = vlaneseq
    %v579 = vshrl.u32 %v578, 7
    %v580 = vsub.s32 0, %v579
    %v581 = vrot.slane %v409, %v580
    %v582 = vmul.f32 %v574, %v581
    %v583 = vmul.f32 %v575, %v581
    %v584 = vmul.f32 %v576, %v581
    %v585 = vmul.f32 %v577, %v581
    %s586 = scalar_lea.vmem %s5, 32
    %v587 = vld [vmem:[%s586] sm:$0xff]
    %v588 = vld [vmem:[%s586 + $0x8] sm:$0xff]
    %v589 = vld [vmem:[%s586 + $0x10] sm:$0xff]
    %v590 = vld [vmem:[%s586 + $0x18] sm:$0xff]
    %592 = vset.pattern.permute.xlu0 0
    %593 = vperm.xlu0 %592, %v587
    %v594 = vpop.permute.xlu0 %593
    %597 = vset.pattern.permute.xlu0 0
    %598 = vperm.xlu0 %597, %v588
    %v599 = vpop.permute.xlu0 %598
    %602 = vset.pattern.permute.xlu0 0
    %603 = vperm.xlu0 %602, %v589
    %v604 = vpop.permute.xlu0 %603
    %607 = vset.pattern.permute.xlu0 0
    %608 = vperm.xlu0 %607, %v590
    %v609 = vpop.permute.xlu0 %608
    %v612 = vsel %vm73, %v582, 0
    %v615 = vsel %vm73, %v583, 0
    %v618 = vsel %vm73, %v584, 0
    %v621 = vsel %vm73, %v585, 0
    %623 = vmatprep.subr.mxu0 %v566
    %624 = vmatpush1.msra.mxu0 %v565
    %625 = vmatprep.subr.mxu0 %v568
    %626 = vmatpush1.msra.mxu0 %v567
    %627 = vmatprep.subr.mxu0 %v570
    %628 = vmatpush1.msra.mxu0 %v569
    %629 = vmatprep.subr.mxu0 %v572
    %630 = vmatpush1.msra.mxu0 %v571
    %631 = vmatprep.subr.mxu0 0.0
    %632 = vmatpush1.msra.mxu0 0.0
    %633 = vmatprep.subr.mxu0 0.0
    %634 = vmatpush1.msra.mxu0 0.0
    %635 = vmatprep.subr.mxu0 0.0
    %636 = vmatpush1.msra.mxu0 0.0
    %637 = vmatprep.subr.mxu0 0.0
    %638 = vmatpush1.msra.mxu0 0.0
    %639 = vmatprep.subr.mxu0 0.0
    %640 = vmatpush1.msra.mxu0 0.0
    %641 = vmatprep.subr.mxu0 0.0
    %642 = vmatpush1.msra.mxu0 0.0
    %643 = vmatprep.subr.mxu0 0.0
    %644 = vmatpush1.msra.mxu0 0.0
    %645 = vmatprep.subr.mxu0 0.0
    %646 = vmatpush1.msra.mxu0 0.0
    %647 = vmatprep.subr.mxu0 0.0
    %648 = vmatpush1.msra.mxu0 0.0
    %649 = vmatprep.subr.mxu0 0.0
    %650 = vmatpush1.msra.mxu0 0.0
    %651 = vmatprep.subr.mxu0 0.0
    %652 = vmatpush1.msra.mxu0 0.0
    %653 = vmatprep.subr.mxu0 0.0
    %654 = vmatpush1.msra.mxu0 0.0
    %655 = vmatprep.subr.mxu0 0.0
    %656 = vmatpush1.msra.mxu0 0.0
    %657 = vmatprep.subr.mxu0 0.0
    %658 = vmatpush1.msra.mxu0 0.0
    %659 = vmatprep.subr.mxu0 0.0
    %660 = vmatpush1.msra.mxu0 0.0
    %661 = vmatprep.subr.mxu0 0.0
    %662 = vmatpush1.msra.mxu0 0.0
    %663 = vmatprep.subr.mxu0 0.0
    %664 = vmatpush1.msra.mxu0 0.0
    %665 = vmatprep.subr.mxu0 0.0
    %666 = vmatpush1.msra.mxu0 0.0
    %667 = vmatprep.subr.mxu0 0.0
    %668 = vmatpush1.msra.mxu0 0.0
    %669 = vmatprep.subr.mxu0 0.0
    %670 = vmatpush1.msra.mxu0 0.0
    %671 = vmatprep.subr.mxu0 0.0
    %672 = vmatpush1.msra.mxu0 0.0
    %673 = vmatprep.subr.mxu0 0.0
    %674 = vmatpush1.msra.mxu0 0.0
    %675 = vmatprep.subr.mxu0 0.0
    %676 = vmatpush1.msra.mxu0 0.0
    %677 = vmatprep.subr.mxu0 0.0
    %678 = vmatpush1.msra.mxu0 0.0
    %679 = vmatprep.subr.mxu0 0.0
    %680 = vmatpush1.msra.mxu0 0.0
    %681 = vmatprep.subr.mxu0 0.0
    %682 = vmatpush1.msra.mxu0 0.0
    %683 = vmatprep.subr.mxu0 0.0
    %684 = vmatpush1.msra.mxu0 0.0
    %685 = vmatprep.subr.mxu0 0.0
    %686 = vmatpush1.msra.mxu0 0.0
    %687 = vmatprep.mubr.f32.mxu0 0.0
    %688 = vmatmul.mubr.f32.gmra.mrb[0].mxu0 %v612
    %v689 = vpop.f32.mrb[0].mxu0
    %v690 = vadd.f32 %v594, %v689
    %v691 = vpop.f32.mrb[0].mxu0
    %v692 = vadd.f32 %v594, %v691
    %693 = vmatprep.mubr.f32.mxu0 0.0
    %694 = vmatmul.mubr.f32.gmra.mrb[0].mxu0 %v615
    %v695 = vpop.f32.mrb[0].mxu0
    %v696 = vadd.f32 %v599, %v695
    %v697 = vpop.f32.mrb[0].mxu0
    %v698 = vadd.f32 %v599, %v697
    %699 = vmatprep.mubr.f32.mxu0 0.0
    %700 = vmatmul.mubr.f32.gmra.mrb[0].mxu0 %v618
    %v701 = vpop.f32.mrb[0].mxu0
    %v702 = vadd.f32 %v604, %v701
    %v703 = vpop.f32.mrb[0].mxu0
    %v704 = vadd.f32 %v604, %v703
    %705 = vmatprep.mubr.f32.mxu0 0.0
    %706 = vmatmul.mubr.f32.gmra.mrb[0].mxu0 %v621
    %v707 = vpop.f32.mrb[0].mxu0
    %v708 = vadd.f32 %v609, %v707
    %v709 = vpop.f32.mrb[0].mxu0
    %v710 = vadd.f32 %v609, %v709
    %711 = vdwg.mxu0
    %vm712 = vcmp.ge.f32.partialorder %v690, 0.0
    %vm713 = vcmp.ge.f32.partialorder %v692, 0.0
    %vm714 = vcmp.ge.f32.partialorder %v696, 0.0
    %vm715 = vcmp.ge.f32.partialorder %v698, 0.0
    %vm716 = vcmp.ge.f32.partialorder %v702, 0.0
    %vm717 = vcmp.ge.f32.partialorder %v704, 0.0
    %vm718 = vcmp.ge.f32.partialorder %v708, 0.0
    %vm719 = vcmp.ge.f32.partialorder %v710, 0.0
    %v720 = vmul.f32 %v690, 0.2
    %v721 = vmul.f32 %v692, 0.2
    %v722 = vmul.f32 %v696, 0.2
    %v723 = vmul.f32 %v698, 0.2
    %v724 = vmul.f32 %v702, 0.2
    %v725 = vmul.f32 %v704, 0.2
    %v726 = vmul.f32 %v708, 0.2
    %v727 = vmul.f32 %v710, 0.2
    %v728 = vsel %vm712, %v690, %v720
    %v729 = vsel %vm713, %v692, %v721
    %v730 = vsel %vm714, %v696, %v722
    %v731 = vsel %vm715, %v698, %v723
    %v732 = vsel %vm716, %v702, %v724
    %v733 = vsel %vm717, %v704, %v725
    %v734 = vsel %vm718, %v708, %v726
    %v735 = vsel %vm719, %v710, %v727
    %s736 = scalar_lea.vmem [#allocation4], 64
    %v737 = vld [vmem:[%s736] sm:$0xff]
    %v738 = vld [vmem:[%s736 + $0x8] sm:$0xff]
    %v739 = vld [vmem:[%s736 + $0x10] sm:$0xff]
    %v740 = vld [vmem:[%s736 + $0x18] sm:$0xff]
    %v741 = vlaneseq
    %v742 = vshrl.u32 %v741, 7
    %v743 = vsub.s32 0, %v742
    %v744 = vrot.slane %v410, %v743
    %v745 = vmul.f32 %v737, %v744
    %v746 = vmul.f32 %v738, %v744
    %v747 = vmul.f32 %v739, %v744
    %v748 = vmul.f32 %v740, %v744
    %s749 = scalar_lea.vmem %s5, 64
    %v750 = vld [vmem:[%s749] sm:$0xff]
    %v751 = vld [vmem:[%s749 + $0x8] sm:$0xff]
    %v752 = vld [vmem:[%s749 + $0x10] sm:$0xff]
    %v753 = vld [vmem:[%s749 + $0x18] sm:$0xff]
    %755 = vset.pattern.permute.xlu0 0
    %756 = vperm.xlu0 %755, %v750
    %v757 = vpop.permute.xlu0 %756
    %760 = vset.pattern.permute.xlu0 0
    %761 = vperm.xlu0 %760, %v751
    %v762 = vpop.permute.xlu0 %761
    %765 = vset.pattern.permute.xlu0 0
    %766 = vperm.xlu0 %765, %v752
    %v767 = vpop.permute.xlu0 %766
    %770 = vset.pattern.permute.xlu0 0
    %771 = vperm.xlu0 %770, %v753
    %v772 = vpop.permute.xlu0 %771
    %v775 = vsel %vm73, %v745, 0
    %v778 = vsel %vm73, %v746, 0
    %v781 = vsel %vm73, %v747, 0
    %v784 = vsel %vm73, %v748, 0
    %786 = vmatprep.subr.mxu0 %v729
    %787 = vmatpush1.msra.mxu0 %v728
    %788 = vmatprep.subr.mxu0 %v731
    %789 = vmatpush1.msra.mxu0 %v730
    %790 = vmatprep.subr.mxu0 %v733
    %791 = vmatpush1.msra.mxu0 %v732
    %792 = vmatprep.subr.mxu0 %v735
    %793 = vmatpush1.msra.mxu0 %v734
    %794 = vmatprep.subr.mxu0 0.0
    %795 = vmatpush1.msra.mxu0 0.0
    %796 = vmatprep.subr.mxu0 0.0
    %797 = vmatpush1.msra.mxu0 0.0
    %798 = vmatprep.subr.mxu0 0.0
    %799 = vmatpush1.msra.mxu0 0.0
    %800 = vmatprep.subr.mxu0 0.0
    %801 = vmatpush1.msra.mxu0 0.0
    %802 = vmatprep.subr.mxu0 0.0
    %803 = vmatpush1.msra.mxu0 0.0
    %804 = vmatprep.subr.mxu0 0.0
    %805 = vmatpush1.msra.mxu0 0.0
    %806 = vmatprep.subr.mxu0 0.0
    %807 = vmatpush1.msra.mxu0 0.0
    %808 = vmatprep.subr.mxu0 0.0
    %809 = vmatpush1.msra.mxu0 0.0
    %810 = vmatprep.subr.mxu0 0.0
    %811 = vmatpush1.msra.mxu0 0.0
    %812 = vmatprep.subr.mxu0 0.0
    %813 = vmatpush1.msra.mxu0 0.0
    %814 = vmatprep.subr.mxu0 0.0
    %815 = vmatpush1.msra.mxu0 0.0
    %816 = vmatprep.subr.mxu0 0.0
    %817 = vmatpush1.msra.mxu0 0.0
    %818 = vmatprep.subr.mxu0 0.0
    %819 = vmatpush1.msra.mxu0 0.0
    %820 = vmatprep.subr.mxu0 0.0
    %821 = vmatpush1.msra.mxu0 0.0
    %822 = vmatprep.subr.mxu0 0.0
    %823 = vmatpush1.msra.mxu0 0.0
    %824 = vmatprep.subr.mxu0 0.0
    %825 = vmatpush1.msra.mxu0 0.0
    %826 = vmatprep.subr.mxu0 0.0
    %827 = vmatpush1.msra.mxu0 0.0
    %828 = vmatprep.subr.mxu0 0.0
    %829 = vmatpush1.msra.mxu0 0.0
    %830 = vmatprep.subr.mxu0 0.0
    %831 = vmatpush1.msra.mxu0 0.0
    %832 = vmatprep.subr.mxu0 0.0
    %833 = vmatpush1.msra.mxu0 0.0
    %834 = vmatprep.subr.mxu0 0.0
    %835 = vmatpush1.msra.mxu0 0.0
    %836 = vmatprep.subr.mxu0 0.0
    %837 = vmatpush1.msra.mxu0 0.0
    %838 = vmatprep.subr.mxu0 0.0
    %839 = vmatpush1.msra.mxu0 0.0
    %840 = vmatprep.subr.mxu0 0.0
    %841 = vmatpush1.msra.mxu0 0.0
    %842 = vmatprep.subr.mxu0 0.0
    %843 = vmatpush1.msra.mxu0 0.0
    %844 = vmatprep.subr.mxu0 0.0
    %845 = vmatpush1.msra.mxu0 0.0
    %846 = vmatprep.subr.mxu0 0.0
    %847 = vmatpush1.msra.mxu0 0.0
    %848 = vmatprep.subr.mxu0 0.0
    %849 = vmatpush1.msra.mxu0 0.0
    %850 = vmatprep.mubr.f32.mxu0 0.0
    %851 = vmatmul.mubr.f32.gmra.mrb[0].mxu0 %v775
    %v852 = vpop.f32.mrb[0].mxu0
    %v853 = vadd.f32 %v757, %v852
    %v854 = vpop.f32.mrb[0].mxu0
    %v855 = vadd.f32 %v757, %v854
    %856 = vmatprep.mubr.f32.mxu0 0.0
    %857 = vmatmul.mubr.f32.gmra.mrb[0].mxu0 %v778
    %v858 = vpop.f32.mrb[0].mxu0
    %v859 = vadd.f32 %v762, %v858
    %v860 = vpop.f32.mrb[0].mxu0
    %v861 = vadd.f32 %v762, %v860
    %862 = vmatprep.mubr.f32.mxu0 0.0
    %863 = vmatmul.mubr.f32.gmra.mrb[0].mxu0 %v781
    %v864 = vpop.f32.mrb[0].mxu0
    %v865 = vadd.f32 %v767, %v864
    %v866 = vpop.f32.mrb[0].mxu0
    %v867 = vadd.f32 %v767, %v866
    %868 = vmatprep.mubr.f32.mxu0 0.0
    %869 = vmatmul.mubr.f32.gmra.mrb[0].mxu0 %v784
    %v870 = vpop.f32.mrb[0].mxu0
    %v871 = vadd.f32 %v772, %v870
    %v872 = vpop.f32.mrb[0].mxu0
    %v873 = vadd.f32 %v772, %v872
    %874 = vdwg.mxu0
    %vm875 = vcmp.ge.f32.partialorder %v853, 0.0
    %vm876 = vcmp.ge.f32.partialorder %v855, 0.0
    %vm877 = vcmp.ge.f32.partialorder %v859, 0.0
    %vm878 = vcmp.ge.f32.partialorder %v861, 0.0
    %vm879 = vcmp.ge.f32.partialorder %v865, 0.0
    %vm880 = vcmp.ge.f32.partialorder %v867, 0.0
    %vm881 = vcmp.ge.f32.partialorder %v871, 0.0
    %vm882 = vcmp.ge.f32.partialorder %v873, 0.0
    %v883 = vmul.f32 %v853, 0.2
    %v884 = vmul.f32 %v855, 0.2
    %v885 = vmul.f32 %v859, 0.2
    %v886 = vmul.f32 %v861, 0.2
    %v887 = vmul.f32 %v865, 0.2
    %v888 = vmul.f32 %v867, 0.2
    %v889 = vmul.f32 %v871, 0.2
    %v890 = vmul.f32 %v873, 0.2
    %v891 = vsel %vm875, %v853, %v883
    %v892 = vsel %vm876, %v855, %v884
    %v893 = vsel %vm877, %v859, %v885
    %v894 = vsel %vm878, %v861, %v886
    %v895 = vsel %vm879, %v865, %v887
    %v896 = vsel %vm880, %v867, %v888
    %v897 = vsel %vm881, %v871, %v889
    %v898 = vsel %vm882, %v873, %v890
    %s899 = scalar_lea.vmem [#allocation4], 96
    %v900 = vld [vmem:[%s899] sm:$0xff]
    %v901 = vld [vmem:[%s899 + $0x8] sm:$0xff]
    %v902 = vld [vmem:[%s899 + $0x10] sm:$0xff]
    %v903 = vld [vmem:[%s899 + $0x18] sm:$0xff]
    %v904 = vlaneseq
    %v905 = vshrl.u32 %v904, 7
    %v906 = vsub.s32 0, %v905
    %v907 = vrot.slane %v411, %v906
    %v908 = vmul.f32 %v900, %v907
    %v909 = vmul.f32 %v901, %v907
    %v910 = vmul.f32 %v902, %v907
    %v911 = vmul.f32 %v903, %v907
    %s912 = scalar_lea.vmem %s5, 96
    %v913 = vld [vmem:[%s912] sm:$0xff]
    %v914 = vld [vmem:[%s912 + $0x8] sm:$0xff]
    %v915 = vld [vmem:[%s912 + $0x10] sm:$0xff]
    %v916 = vld [vmem:[%s912 + $0x18] sm:$0xff]
    %918 = vset.pattern.permute.xlu0 0
    %919 = vperm.xlu0 %918, %v913
    %v920 = vpop.permute.xlu0 %919
    %923 = vset.pattern.permute.xlu0 0
    %924 = vperm.xlu0 %923, %v914
    %v925 = vpop.permute.xlu0 %924
    %928 = vset.pattern.permute.xlu0 0
    %929 = vperm.xlu0 %928, %v915
    %v930 = vpop.permute.xlu0 %929
    %933 = vset.pattern.permute.xlu0 0
    %934 = vperm.xlu0 %933, %v916
    %v935 = vpop.permute.xlu0 %934
    %v938 = vsel %vm73, %v908, 0
    %v941 = vsel %vm73, %v909, 0
    %v944 = vsel %vm73, %v910, 0
    %v947 = vsel %vm73, %v911, 0
    %949 = vmatprep.subr.mxu0 %v892
    %950 = vmatpush1.msra.mxu0 %v891
    %951 = vmatprep.subr.mxu0 %v894
    %952 = vmatpush1.msra.mxu0 %v893
    %953 = vmatprep.subr.mxu0 %v896
    %954 = vmatpush1.msra.mxu0 %v895
    %955 = vmatprep.subr.mxu0 %v898
    %956 = vmatpush1.msra.mxu0 %v897
    %957 = vmatprep.subr.mxu0 0.0
    %958 = vmatpush1.msra.mxu0 0.0
    %959 = vmatprep.subr.mxu0 0.0
    %960 = vmatpush1.msra.mxu0 0.0
    %961 = vmatprep.subr.mxu0 0.0
    %962 = vmatpush1.msra.mxu0 0.0
    %963 = vmatprep.subr.mxu0 0.0
    %964 = vmatpush1.msra.mxu0 0.0
    %965 = vmatprep.subr.mxu0 0.0
    %966 = vmatpush1.msra.mxu0 0.0
    %967 = vmatprep.subr.mxu0 0.0
    %968 = vmatpush1.msra.mxu0 0.0
    %969 = vmatprep.subr.mxu0 0.0
    %970 = vmatpush1.msra.mxu0 0.0
    %971 = vmatprep.subr.mxu0 0.0
    %972 = vmatpush1.msra.mxu0 0.0
    %973 = vmatprep.subr.mxu0 0.0
    %974 = vmatpush1.msra.mxu0 0.0
    %975 = vmatprep.subr.mxu0 0.0
    %976 = vmatpush1.msra.mxu0 0.0
    %977 = vmatprep.subr.mxu0 0.0
    %978 = vmatpush1.msra.mxu0 0.0
    %979 = vmatprep.subr.mxu0 0.0
    %980 = vmatpush1.msra.mxu0 0.0
    %981 = vmatprep.subr.mxu0 0.0
    %982 = vmatpush1.msra.mxu0 0.0
    %983 = vmatprep.subr.mxu0 0.0
    %984 = vmatpush1.msra.mxu0 0.0
    %985 = vmatprep.subr.mxu0 0.0
    %986 = vmatpush1.msra.mxu0 0.0
    %987 = vmatprep.subr.mxu0 0.0
    %988 = vmatpush1.msra.mxu0 0.0
    %989 = vmatprep.subr.mxu0 0.0
    %990 = vmatpush1.msra.mxu0 0.0
    %991 = vmatprep.subr.mxu0 0.0
    %992 = vmatpush1.msra.mxu0 0.0
    %993 = vmatprep.subr.mxu0 0.0
    %994 = vmatpush1.msra.mxu0 0.0
    %995 = vmatprep.subr.mxu0 0.0
    %996 = vmatpush1.msra.mxu0 0.0
    %997 = vmatprep.subr.mxu0 0.0
    %998 = vmatpush1.msra.mxu0 0.0
    %999 = vmatprep.subr.mxu0 0.0
    %1000 = vmatpush1.msra.mxu0 0.0
    %1001 = vmatprep.subr.mxu0 0.0
    %1002 = vmatpush1.msra.mxu0 0.0
    %1003 = vmatprep.subr.mxu0 0.0
    %1004 = vmatpush1.msra.mxu0 0.0
    %1005 = vmatprep.subr.mxu0 0.0
    %1006 = vmatpush1.msra.mxu0 0.0
    %1007 = vmatprep.subr.mxu0 0.0
    %1008 = vmatpush1.msra.mxu0 0.0
    %1009 = vmatprep.subr.mxu0 0.0
    %1010 = vmatpush1.msra.mxu0 0.0
    %1011 = vmatprep.subr.mxu0 0.0
    %1012 = vmatpush1.msra.mxu0 0.0
    %1013 = vmatprep.mubr.f32.mxu0 0.0
    %1014 = vmatmul.mubr.f32.gmra.mrb[0].mxu0 %v938
    %v1015 = vpop.f32.mrb[0].mxu0
    %v1016 = vadd.f32 %v920, %v1015
    %v1017 = vpop.f32.mrb[0].mxu0
    %v1018 = vadd.f32 %v920, %v1017
    %1019 = vmatprep.mubr.f32.mxu0 0.0
    %1020 = vmatmul.mubr.f32.gmra.mrb[0].mxu0 %v941
    %v1021 = vpop.f32.mrb[0].mxu0
    %v1022 = vadd.f32 %v925, %v1021
    %v1023 = vpop.f32.mrb[0].mxu0
    %v1024 = vadd.f32 %v925, %v1023
    %1025 = vmatprep.mubr.f32.mxu0 0.0
    %1026 = vmatmul.mubr.f32.gmra.mrb[0].mxu0 %v944
    %v1027 = vpop.f32.mrb[0].mxu0
    %v1028 = vadd.f32 %v930, %v1027
    %v1029 = vpop.f32.mrb[0].mxu0
    %v1030 = vadd.f32 %v930, %v1029
    %1031 = vmatprep.mubr.f32.mxu0 0.0
    %1032 = vmatmul.mubr.f32.gmra.mrb[0].mxu0 %v947
    %v1033 = vpop.f32.mrb[0].mxu0
    %v1034 = vadd.f32 %v935, %v1033
    %v1035 = vpop.f32.mrb[0].mxu0
    %v1036 = vadd.f32 %v935, %v1035
    %1037 = vdwg.mxu0
    %vm1038 = vcmp.ge.f32.partialorder %v1016, 0.0
    %vm1039 = vcmp.ge.f32.partialorder %v1018, 0.0
    %vm1040 = vcmp.ge.f32.partialorder %v1022, 0.0
    %vm1041 = vcmp.ge.f32.partialorder %v1024, 0.0
    %vm1042 = vcmp.ge.f32.partialorder %v1028, 0.0
    %vm1043 = vcmp.ge.f32.partialorder %v1030, 0.0
    %vm1044 = vcmp.ge.f32.partialorder %v1034, 0.0
    %vm1045 = vcmp.ge.f32.partialorder %v1036, 0.0
    %v1046 = vmul.f32 %v1016, 0.2
    %v1047 = vmul.f32 %v1018, 0.2
    %v1048 = vmul.f32 %v1022, 0.2
    %v1049 = vmul.f32 %v1024, 0.2
    %v1050 = vmul.f32 %v1028, 0.2
    %v1051 = vmul.f32 %v1030, 0.2
    %v1052 = vmul.f32 %v1034, 0.2
    %v1053 = vmul.f32 %v1036, 0.2
    %v1054 = vsel %vm1038, %v1016, %v1046
    %v1055 = vsel %vm1039, %v1018, %v1047
    %v1056 = vsel %vm1040, %v1022, %v1048
    %v1057 = vsel %vm1041, %v1024, %v1049
    %v1058 = vsel %vm1042, %v1028, %v1050
    %v1059 = vsel %vm1043, %v1030, %v1051
    %v1060 = vsel %vm1044, %v1034, %v1052
    %v1061 = vsel %vm1045, %v1036, %v1053
    %v1062 = vld [vmem:[%s6] sm:$0x7]
    %v1063 = vld [vmem:[%s7] sm:$0x7]
    %1065 = vset.pattern.permute.xlu0 0
    %1066 = vperm.xlu0 %1065, %v1063
    %v1067 = vpop.permute.xlu0 %1066
    %v1070 = vsel %vm73, %v1062, 0
    %1072 = vmatprep.subr.mxu0 %v1055
    %1073 = vmatpush1.msra.mxu0 %v1054
    %1074 = vmatprep.subr.mxu0 %v1057
    %1075 = vmatpush1.msra.mxu0 %v1056
    %1076 = vmatprep.subr.mxu0 %v1059
    %1077 = vmatpush1.msra.mxu0 %v1058
    %1078 = vmatprep.subr.mxu0 %v1061
    %1079 = vmatpush1.msra.mxu0 %v1060
    %1080 = vmatprep.subr.mxu0 0.0
    %1081 = vmatpush1.msra.mxu0 0.0
    %1082 = vmatprep.subr.mxu0 0.0
    %1083 = vmatpush1.msra.mxu0 0.0
    %1084 = vmatprep.subr.mxu0 0.0
    %1085 = vmatpush1.msra.mxu0 0.0
    %1086 = vmatprep.subr.mxu0 0.0
    %1087 = vmatpush1.msra.mxu0 0.0
    %1088 = vmatprep.subr.mxu0 0.0
    %1089 = vmatpush1.msra.mxu0 0.0
    %1090 = vmatprep.subr.mxu0 0.0
    %1091 = vmatpush1.msra.mxu0 0.0
    %1092 = vmatprep.subr.mxu0 0.0
    %1093 = vmatpush1.msra.mxu0 0.0
    %1094 = vmatprep.subr.mxu0 0.0
    %1095 = vmatpush1.msra.mxu0 0.0
    %1096 = vmatprep.subr.mxu0 0.0
    %1097 = vmatpush1.msra.mxu0 0.0
    %1098 = vmatprep.subr.mxu0 0.0
    %1099 = vmatpush1.msra.mxu0 0.0
    %1100 = vmatprep.subr.mxu0 0.0
    %1101 = vmatpush1.msra.mxu0 0.0
    %1102 = vmatprep.subr.mxu0 0.0
    %1103 = vmatpush1.msra.mxu0 0.0
    %1104 = vmatprep.subr.mxu0 0.0
    %1105 = vmatpush1.msra.mxu0 0.0
    %1106 = vmatprep.subr.mxu0 0.0
    %1107 = vmatpush1.msra.mxu0 0.0
    %1108 = vmatprep.subr.mxu0 0.0
    %1109 = vmatpush1.msra.mxu0 0.0
    %1110 = vmatprep.subr.mxu0 0.0
    %1111 = vmatpush1.msra.mxu0 0.0
    %1112 = vmatprep.subr.mxu0 0.0
    %1113 = vmatpush1.msra.mxu0 0.0
    %1114 = vmatprep.subr.mxu0 0.0
    %1115 = vmatpush1.msra.mxu0 0.0
    %1116 = vmatprep.subr.mxu0 0.0
    %1117 = vmatpush1.msra.mxu0 0.0
    %1118 = vmatprep.subr.mxu0 0.0
    %1119 = vmatpush1.msra.mxu0 0.0
    %1120 = vmatprep.subr.mxu0 0.0
    %1121 = vmatpush1.msra.mxu0 0.0
    %1122 = vmatprep.subr.mxu0 0.0
    %1123 = vmatpush1.msra.mxu0 0.0
    %1124 = vmatprep.subr.mxu0 0.0
    %1125 = vmatpush1.msra.mxu0 0.0
    %1126 = vmatprep.subr.mxu0 0.0
    %1127 = vmatpush1.msra.mxu0 0.0
    %1128 = vmatprep.subr.mxu0 0.0
    %1129 = vmatpush1.msra.mxu0 0.0
    %1130 = vmatprep.subr.mxu0 0.0
    %1131 = vmatpush1.msra.mxu0 0.0
    %1132 = vmatprep.subr.mxu0 0.0
    %1133 = vmatpush1.msra.mxu0 0.0
    %1134 = vmatprep.subr.mxu0 0.0
    %1135 = vmatpush1.msra.mxu0 0.0
    %1136 = vmatprep.mubr.f32.mxu0 0.0
    %1137 = vmatmul.mubr.f32.gmra.mrb[0].mxu0 %v1070
    %v1138 = vpop.f32.mrb[0].mxu0
    %v1139 = vadd.f32 %v1067, %v1138
    %v1140 = vpop.f32.mrb[0].mxu0
    %v1141 = vadd.f32 %v1067, %v1140
    %1142 = vdwg.mxu0
    %v1145 = vcombine.low %v1139, %v1141
    %1147 = vst [vmem:[%s8] sm:$0x77] %v1145
    %v1148 = vld [vmem:[#allocation4] sm:$0xff]
    %v1149 = vld [vmem:[#allocation4 + $0x8] sm:$0xff]
    %v1150 = vld [vmem:[#allocation4 + $0x10] sm:$0xff]
    %v1151 = vld [vmem:[#allocation4 + $0x18] sm:$0xff]
    %v1152 = vlaneseq
    %v1153 = vshrl.u32 %v1152, 7
    %v1154 = vsub.s32 1, %v1153
    %v1155 = vrot.slane %v408, %v1154
    %v1156 = vmul.f32 %v1148, %v1155
    %v1157 = vmul.f32 %v1149, %v1155
    %v1158 = vmul.f32 %v1150, %v1155
    %v1159 = vmul.f32 %v1151, %v1155
    %v1160 = vld [vmem:[%s5] sm:$0xff]
    %v1161 = vld [vmem:[%s5 + $0x8] sm:$0xff]
    %v1162 = vld [vmem:[%s5 + $0x10] sm:$0xff]
    %v1163 = vld [vmem:[%s5 + $0x18] sm:$0xff]
    %1165 = vset.pattern.permute.xlu0 0
    %1166 = vperm.xlu0 %1165, %v1160
    %v1167 = vpop.permute.xlu0 %1166
    %1170 = vset.pattern.permute.xlu0 0
    %1171 = vperm.xlu0 %1170, %v1161
    %v1172 = vpop.permute.xlu0 %1171
    %1175 = vset.pattern.permute.xlu0 0
    %1176 = vperm.xlu0 %1175, %v1162
    %v1177 = vpop.permute.xlu0 %1176
    %1180 = vset.pattern.permute.xlu0 0
    %1181 = vperm.xlu0 %1180, %v1163
    %v1182 = vpop.permute.xlu0 %1181
    %v1185 = vsel %vm73, %v1156, 0
    %v1188 = vsel %vm73, %v1157, 0
    %v1191 = vsel %vm73, %v1158, 0
    %v1194 = vsel %vm73, %v1159, 0
    %1196 = vmatprep.subr.mxu0 %v401
    %1197 = vmatpush1.msra.mxu0 %v400
    %1198 = vmatprep.subr.mxu0 %v403
    %1199 = vmatpush1.msra.mxu0 %v402
    %1200 = vmatprep.subr.mxu0 %v405
    %1201 = vmatpush1.msra.mxu0 %v404
    %1202 = vmatprep.subr.mxu0 %v407
    %1203 = vmatpush1.msra.mxu0 %v406
    %1204 = vmatprep.subr.mxu0 0.0
    %1205 = vmatpush1.msra.mxu0 0.0
    %1206 = vmatprep.subr.mxu0 0.0
    %1207 = vmatpush1.msra.mxu0 0.0
    %1208 = vmatprep.subr.mxu0 0.0
    %1209 = vmatpush1.msra.mxu0 0.0
    %1210 = vmatprep.subr.mxu0 0.0
    %1211 = vmatpush1.msra.mxu0 0.0
    %1212 = vmatprep.subr.mxu0 0.0
    %1213 = vmatpush1.msra.mxu0 0.0
    %1214 = vmatprep.subr.mxu0 0.0
    %1215 = vmatpush1.msra.mxu0 0.0
    %1216 = vmatprep.subr.mxu0 0.0
    %1217 = vmatpush1.msra.mxu0 0.0
    %1218 = vmatprep.subr.mxu0 0.0
    %1219 = vmatpush1.msra.mxu0 0.0
    %1220 = vmatprep.subr.mxu0 0.0
    %1221 = vmatpush1.msra.mxu0 0.0
    %1222 = vmatprep.subr.mxu0 0.0
    %1223 = vmatpush1.msra.mxu0 0.0
    %1224 = vmatprep.subr.mxu0 0.0
    %1225 = vmatpush1.msra.mxu0 0.0
    %1226 = vmatprep.subr.mxu0 0.0
    %1227 = vmatpush1.msra.mxu0 0.0
    %1228 = vmatprep.subr.mxu0 0.0
    %1229 = vmatpush1.msra.mxu0 0.0
    %1230 = vmatprep.subr.mxu0 0.0
    %1231 = vmatpush1.msra.mxu0 0.0
    %1232 = vmatprep.subr.mxu0 0.0
    %1233 = vmatpush1.msra.mxu0 0.0
    %1234 = vmatprep.subr.mxu0 0.0
    %1235 = vmatpush1.msra.mxu0 0.0
    %1236 = vmatprep.subr.mxu0 0.0
    %1237 = vmatpush1.msra.mxu0 0.0
    %1238 = vmatprep.subr.mxu0 0.0
    %1239 = vmatpush1.msra.mxu0 0.0
    %1240 = vmatprep.subr.mxu0 0.0
    %1241 = vmatpush1.msra.mxu0 0.0
    %1242 = vmatprep.subr.mxu0 0.0
    %1243 = vmatpush1.msra.mxu0 0.0
    %1244 = vmatprep.subr.mxu0 0.0
    %1245 = vmatpush1.msra.mxu0 0.0
    %1246 = vmatprep.subr.mxu0 0.0
    %1247 = vmatpush1.msra.mxu0 0.0
    %1248 = vmatprep.subr.mxu0 0.0
    %1249 = vmatpush1.msra.mxu0 0.0
    %1250 = vmatprep.subr.mxu0 0.0
    %1251 = vmatpush1.msra.mxu0 0.0
    %1252 = vmatprep.subr.mxu0 0.0
    %1253 = vmatpush1.msra.mxu0 0.0
    %1254 = vmatprep.subr.mxu0 0.0
    %1255 = vmatpush1.msra.mxu0 0.0
    %1256 = vmatprep.subr.mxu0 0.0
    %1257 = vmatpush1.msra.mxu0 0.0
    %1258 = vmatprep.subr.mxu0 0.0
    %1259 = vmatpush1.msra.mxu0 0.0
    %1260 = vmatprep.mubr.f32.mxu0 0.0
    %1261 = vmatmul.mubr.f32.gmra.mrb[0].mxu0 %v1185
    %v1262 = vpop.f32.mrb[0].mxu0
    %v1263 = vadd.f32 %v1167, %v1262
    %v1264 = vpop.f32.mrb[0].mxu0
    %v1265 = vadd.f32 %v1167, %v1264
    %1266 = vmatprep.mubr.f32.mxu0 0.0
    %1267 = vmatmul.mubr.f32.gmra.mrb[0].mxu0 %v1188
    %v1268 = vpop.f32.mrb[0].mxu0
    %v1269 = vadd.f32 %v1172, %v1268
    %v1270 = vpop.f32.mrb[0].mxu0
    %v1271 = vadd.f32 %v1172, %v1270
    %1272 = vmatprep.mubr.f32.mxu0 0.0
    %1273 = vmatmul.mubr.f32.gmra.mrb[0].mxu0 %v1191
    %v1274 = vpop.f32.mrb[0].mxu0
    %v1275 = vadd.f32 %v1177, %v1274
    %v1276 = vpop.f32.mrb[0].mxu0
    %v1277 = vadd.f32 %v1177, %v1276
    %1278 = vmatprep.mubr.f32.mxu0 0.0
    %1279 = vmatmul.mubr.f32.gmra.mrb[0].mxu0 %v1194
    %v1280 = vpop.f32.mrb[0].mxu0
    %v1281 = vadd.f32 %v1182, %v1280
    %v1282 = vpop.f32.mrb[0].mxu0
    %v1283 = vadd.f32 %v1182, %v1282
    %1284 = vdwg.mxu0
    %vm1285 = vcmp.ge.f32.partialorder %v1263, 0.0
    %vm1286 = vcmp.ge.f32.partialorder %v1265, 0.0
    %vm1287 = vcmp.ge.f32.partialorder %v1269, 0.0
    %vm1288 = vcmp.ge.f32.partialorder %v1271, 0.0
    %vm1289 = vcmp.ge.f32.partialorder %v1275, 0.0
    %vm1290 = vcmp.ge.f32.partialorder %v1277, 0.0
    %vm1291 = vcmp.ge.f32.partialorder %v1281, 0.0
    %vm1292 = vcmp.ge.f32.partialorder %v1283, 0.0
    %v1293 = vmul.f32 %v1263, 0.2
    %v1294 = vmul.f32 %v1265, 0.2
    %v1295 = vmul.f32 %v1269, 0.2
    %v1296 = vmul.f32 %v1271, 0.2
    %v1297 = vmul.f32 %v1275, 0.2
    %v1298 = vmul.f32 %v1277, 0.2
    %v1299 = vmul.f32 %v1281, 0.2
    %v1300 = vmul.f32 %v1283, 0.2
    %v1301 = vsel %vm1285, %v1263, %v1293
    %v1302 = vsel %vm1286, %v1265, %v1294
    %v1303 = vsel %vm1287, %v1269, %v1295
    %v1304 = vsel %vm1288, %v1271, %v1296
    %v1305 = vsel %vm1289, %v1275, %v1297
    %v1306 = vsel %vm1290, %v1277, %v1298
    %v1307 = vsel %vm1291, %v1281, %v1299
    %v1308 = vsel %vm1292, %v1283, %v1300
    %v1309 = vld [vmem:[%s573] sm:$0xff]
    %v1310 = vld [vmem:[%s573 + $0x8] sm:$0xff]
    %v1311 = vld [vmem:[%s573 + $0x10] sm:$0xff]
    %v1312 = vld [vmem:[%s573 + $0x18] sm:$0xff]
    %v1313 = vlaneseq
    %v1314 = vshrl.u32 %v1313, 7
    %v1315 = vsub.s32 1, %v1314
    %v1316 = vrot.slane %v409, %v1315
    %v1317 = vmul.f32 %v1309, %v1316
    %v1318 = vmul.f32 %v1310, %v1316
    %v1319 = vmul.f32 %v1311, %v1316
    %v1320 = vmul.f32 %v1312, %v1316
    %v1321 = vld [vmem:[%s586] sm:$0xff]
    %v1322 = vld [vmem:[%s586 + $0x8] sm:$0xff]
    %v1323 = vld [vmem:[%s586 + $0x10] sm:$0xff]
    %v1324 = vld [vmem:[%s586 + $0x18] sm:$0xff]
    %1326 = vset.pattern.permute.xlu0 0
    %1327 = vperm.xlu0 %1326, %v1321
    %v1328 = vpop.permute.xlu0 %1327
    %1331 = vset.pattern.permute.xlu0 0
    %1332 = vperm.xlu0 %1331, %v1322
    %v1333 = vpop.permute.xlu0 %1332
    %1336 = vset.pattern.permute.xlu0 0
    %1337 = vperm.xlu0 %1336, %v1323
    %v1338 = vpop.permute.xlu0 %1337
    %1341 = vset.pattern.permute.xlu0 0
    %1342 = vperm.xlu0 %1341, %v1324
    %v1343 = vpop.permute.xlu0 %1342
    %v1346 = vsel %vm73, %v1317, 0
    %v1349 = vsel %vm73, %v1318, 0
    %v1352 = vsel %vm73, %v1319, 0
    %v1355 = vsel %vm73, %v1320, 0
    %1357 = vmatprep.subr.mxu0 %v1302
    %1358 = vmatpush1.msra.mxu0 %v1301
    %1359 = vmatprep.subr.mxu0 %v1304
    %1360 = vmatpush1.msra.mxu0 %v1303
    %1361 = vmatprep.subr.mxu0 %v1306
    %1362 = vmatpush1.msra.mxu0 %v1305
    %1363 = vmatprep.subr.mxu0 %v1308
    %1364 = vmatpush1.msra.mxu0 %v1307
    %1365 = vmatprep.subr.mxu0 0.0
    %1366 = vmatpush1.msra.mxu0 0.0
    %1367 = vmatprep.subr.mxu0 0.0
    %1368 = vmatpush1.msra.mxu0 0.0
    %1369 = vmatprep.subr.mxu0 0.0
    %1370 = vmatpush1.msra.mxu0 0.0
    %1371 = vmatprep.subr.mxu0 0.0
    %1372 = vmatpush1.msra.mxu0 0.0
    %1373 = vmatprep.subr.mxu0 0.0
    %1374 = vmatpush1.msra.mxu0 0.0
    %1375 = vmatprep.subr.mxu0 0.0
    %1376 = vmatpush1.msra.mxu0 0.0
    %1377 = vmatprep.subr.mxu0 0.0
    %1378 = vmatpush1.msra.mxu0 0.0
    %1379 = vmatprep.subr.mxu0 0.0
    %1380 = vmatpush1.msra.mxu0 0.0
    %1381 = vmatprep.subr.mxu0 0.0
    %1382 = vmatpush1.msra.mxu0 0.0
    %1383 = vmatprep.subr.mxu0 0.0
    %1384 = vmatpush1.msra.mxu0 0.0
    %1385 = vmatprep.subr.mxu0 0.0
    %1386 = vmatpush1.msra.mxu0 0.0
    %1387 = vmatprep.subr.mxu0 0.0
    %1388 = vmatpush1.msra.mxu0 0.0
    %1389 = vmatprep.subr.mxu0 0.0
    %1390 = vmatpush1.msra.mxu0 0.0
    %1391 = vmatprep.subr.mxu0 0.0
    %1392 = vmatpush1.msra.mxu0 0.0
    %1393 = vmatprep.subr.mxu0 0.0
    %1394 = vmatpush1.msra.mxu0 0.0
    %1395 = vmatprep.subr.mxu0 0.0
    %1396 = vmatpush1.msra.mxu0 0.0
    %1397 = vmatprep.subr.mxu0 0.0
    %1398 = vmatpush1.msra.mxu0 0.0
    %1399 = vmatprep.subr.mxu0 0.0
    %1400 = vmatpush1.msra.mxu0 0.0
    %1401 = vmatprep.subr.mxu0 0.0
    %1402 = vmatpush1.msra.mxu0 0.0
    %1403 = vmatprep.subr.mxu0 0.0
    %1404 = vmatpush1.msra.mxu0 0.0
    %1405 = vmatprep.subr.mxu0 0.0
    %1406 = vmatpush1.msra.mxu0 0.0
    %1407 = vmatprep.subr.mxu0 0.0
    %1408 = vmatpush1.msra.mxu0 0.0
    %1409 = vmatprep.subr.mxu0 0.0
    %1410 = vmatpush1.msra.mxu0 0.0
    %1411 = vmatprep.subr.mxu0 0.0
    %1412 = vmatpush1.msra.mxu0 0.0
    %1413 = vmatprep.subr.mxu0 0.0
    %1414 = vmatpush1.msra.mxu0 0.0
    %1415 = vmatprep.subr.mxu0 0.0
    %1416 = vmatpush1.msra.mxu0 0.0
    %1417 = vmatprep.subr.mxu0 0.0
    %1418 = vmatpush1.msra.mxu0 0.0
    %1419 = vmatprep.subr.mxu0 0.0
    %1420 = vmatpush1.msra.mxu0 0.0
    %1421 = vmatprep.mubr.f32.mxu0 0.0
    %1422 = vmatmul.mubr.f32.gmra.mrb[0].mxu0 %v1346
    %v1423 = vpop.f32.mrb[0].mxu0
    %v1424 = vadd.f32 %v1328, %v1423
    %v1425 = vpop.f32.mrb[0].mxu0
    %v1426 = vadd.f32 %v1328, %v1425
    %1427 = vmatprep.mubr.f32.mxu0 0.0
    %1428 = vmatmul.mubr.f32.gmra.mrb[0].mxu0 %v1349
    %v1429 = vpop.f32.mrb[0].mxu0
    %v1430 = vadd.f32 %v1333, %v1429
    %v1431 = vpop.f32.mrb[0].mxu0
    %v1432 = vadd.f32 %v1333, %v1431
    %1433 = vmatprep.mubr.f32.mxu0 0.0
    %1434 = vmatmul.mubr.f32.gmra.mrb[0].mxu0 %v1352
    %v1435 = vpop.f32.mrb[0].mxu0
    %v1436 = vadd.f32 %v1338, %v1435
    %v1437 = vpop.f32.mrb[0].mxu0
    %v1438 = vadd.f32 %v1338, %v1437
    %1439 = vmatprep.mubr.f32.mxu0 0.0
    %1440 = vmatmul.mubr.f32.gmra.mrb[0].mxu0 %v1355
    %v1441 = vpop.f32.mrb[0].mxu0
    %v1442 = vadd.f32 %v1343, %v1441
    %v1443 = vpop.f32.mrb[0].mxu0
    %v1444 = vadd.f32 %v1343, %v1443
    %1445 = vdwg.mxu0
    %vm1446 = vcmp.ge.f32.partialorder %v1424, 0.0
    %vm1447 = vcmp.ge.f32.partialorder %v1426, 0.0
    %vm1448 = vcmp.ge.f32.partialorder %v1430, 0.0
    %vm1449 = vcmp.ge.f32.partialorder %v1432, 0.0
    %vm1450 = vcmp.ge.f32.partialorder %v1436, 0.0
    %vm1451 = vcmp.ge.f32.partialorder %v1438, 0.0
    %vm1452 = vcmp.ge.f32.partialorder %v1442, 0.0
    %vm1453 = vcmp.ge.f32.partialorder %v1444, 0.0
    %v1454 = vmul.f32 %v1424, 0.2
    %v1455 = vmul.f32 %v1426, 0.2
    %v1456 = vmul.f32 %v1430, 0.2
    %v1457 = vmul.f32 %v1432, 0.2
    %v1458 = vmul.f32 %v1436, 0.2
    %v1459 = vmul.f32 %v1438, 0.2
    %v1460 = vmul.f32 %v1442, 0.2
    %v1461 = vmul.f32 %v1444, 0.2
    %v1462 = vsel %vm1446, %v1424, %v1454
    %v1463 = vsel %vm1447, %v1426, %v1455
    %v1464 = vsel %vm1448, %v1430, %v1456
    %v1465 = vsel %vm1449, %v1432, %v1457
    %v1466 = vsel %vm1450, %v1436, %v1458
    %v1467 = vsel %vm1451, %v1438, %v1459
    %v1468 = vsel %vm1452, %v1442, %v1460
    %v1469 = vsel %vm1453, %v1444, %v1461
    %v1470 = vld [vmem:[%s736] sm:$0xff]
    %v1471 = vld [vmem:[%s736 + $0x8] sm:$0xff]
    %v1472 = vld [vmem:[%s736 + $0x10] sm:$0xff]
    %v1473 = vld [vmem:[%s736 + $0x18] sm:$0xff]
    %v1474 = vlaneseq
    %v1475 = vshrl.u32 %v1474, 7
    %v1476 = vsub.s32 1, %v1475
    %v1477 = vrot.slane %v410, %v1476
    %v1478 = vmul.f32 %v1470, %v1477
    %v1479 = vmul.f32 %v1471, %v1477
    %v1480 = vmul.f32 %v1472, %v1477
    %v1481 = vmul.f32 %v1473, %v1477
    %v1482 = vld [vmem:[%s749] sm:$0xff]
    %v1483 = vld [vmem:[%s749 + $0x8] sm:$0xff]
    %v1484 = vld [vmem:[%s749 + $0x10] sm:$0xff]
    %v1485 = vld [vmem:[%s749 + $0x18] sm:$0xff]
    %1487 = vset.pattern.permute.xlu0 0
    %1488 = vperm.xlu0 %1487, %v1482
    %v1489 = vpop.permute.xlu0 %1488
    %1492 = vset.pattern.permute.xlu0 0
    %1493 = vperm.xlu0 %1492, %v1483
    %v1494 = vpop.permute.xlu0 %1493
    %1497 = vset.pattern.permute.xlu0 0
    %1498 = vperm.xlu0 %1497, %v1484
    %v1499 = vpop.permute.xlu0 %1498
    %1502 = vset.pattern.permute.xlu0 0
    %1503 = vperm.xlu0 %1502, %v1485
    %v1504 = vpop.permute.xlu0 %1503
    %v1507 = vsel %vm73, %v1478, 0
    %v1510 = vsel %vm73, %v1479, 0
    %v1513 = vsel %vm73, %v1480, 0
    %v1516 = vsel %vm73, %v1481, 0
    %1518 = vmatprep.subr.mxu0 %v1463
    %1519 = vmatpush1.msra.mxu0 %v1462
    %1520 = vmatprep.subr.mxu0 %v1465
    %1521 = vmatpush1.msra.mxu0 %v1464
    %1522 = vmatprep.subr.mxu0 %v1467
    %1523 = vmatpush1.msra.mxu0 %v1466
    %1524 = vmatprep.subr.mxu0 %v1469
    %1525 = vmatpush1.msra.mxu0 %v1468
    %1526 = vmatprep.subr.mxu0 0.0
    %1527 = vmatpush1.msra.mxu0 0.0
    %1528 = vmatprep.subr.mxu0 0.0
    %1529 = vmatpush1.msra.mxu0 0.0
    %1530 = vmatprep.subr.mxu0 0.0
    %1531 = vmatpush1.msra.mxu0 0.0
    %1532 = vmatprep.subr.mxu0 0.0
    %1533 = vmatpush1.msra.mxu0 0.0
    %1534 = vmatprep.subr.mxu0 0.0
    %1535 = vmatpush1.msra.mxu0 0.0
    %1536 = vmatprep.subr.mxu0 0.0
    %1537 = vmatpush1.msra.mxu0 0.0
    %1538 = vmatprep.subr.mxu0 0.0
    %1539 = vmatpush1.msra.mxu0 0.0
    %1540 = vmatprep.subr.mxu0 0.0
    %1541 = vmatpush1.msra.mxu0 0.0
    %1542 = vmatprep.subr.mxu0 0.0
    %1543 = vmatpush1.msra.mxu0 0.0
    %1544 = vmatprep.subr.mxu0 0.0
    %1545 = vmatpush1.msra.mxu0 0.0
    %1546 = vmatprep.subr.mxu0 0.0
    %1547 = vmatpush1.msra.mxu0 0.0
    %1548 = vmatprep.subr.mxu0 0.0
    %1549 = vmatpush1.msra.mxu0 0.0
    %1550 = vmatprep.subr.mxu0 0.0
    %1551 = vmatpush1.msra.mxu0 0.0
    %1552 = vmatprep.subr.mxu0 0.0
    %1553 = vmatpush1.msra.mxu0 0.0
    %1554 = vmatprep.subr.mxu0 0.0
    %1555 = vmatpush1.msra.mxu0 0.0
    %1556 = vmatprep.subr.mxu0 0.0
    %1557 = vmatpush1.msra.mxu0 0.0
    %1558 = vmatprep.subr.mxu0 0.0
    %1559 = vmatpush1.msra.mxu0 0.0
    %1560 = vmatprep.subr.mxu0 0.0
    %1561 = vmatpush1.msra.mxu0 0.0
    %1562 = vmatprep.subr.mxu0 0.0
    %1563 = vmatpush1.msra.mxu0 0.0
    %1564 = vmatprep.subr.mxu0 0.0
    %1565 = vmatpush1.msra.mxu0 0.0
    %1566 = vmatprep.subr.mxu0 0.0
    %1567 = vmatpush1.msra.mxu0 0.0
    %1568 = vmatprep.subr.mxu0 0.0
    %1569 = vmatpush1.msra.mxu0 0.0
    %1570 = vmatprep.subr.mxu0 0.0
    %1571 = vmatpush1.msra.mxu0 0.0
    %1572 = vmatprep.subr.mxu0 0.0
    %1573 = vmatpush1.msra.mxu0 0.0
    %1574 = vmatprep.subr.mxu0 0.0
    %1575 = vmatpush1.msra.mxu0 0.0
    %1576 = vmatprep.subr.mxu0 0.0
    %1577 = vmatpush1.msra.mxu0 0.0
    %1578 = vmatprep.subr.mxu0 0.0
    %1579 = vmatpush1.msra.mxu0 0.0
    %1580 = vmatprep.subr.mxu0 0.0
    %1581 = vmatpush1.msra.mxu0 0.0
    %1582 = vmatprep.mubr.f32.mxu0 0.0
    %1583 = vmatmul.mubr.f32.gmra.mrb[0].mxu0 %v1507
    %v1584 = vpop.f32.mrb[0].mxu0
    %v1585 = vadd.f32 %v1489, %v1584
    %v1586 = vpop.f32.mrb[0].mxu0
    %v1587 = vadd.f32 %v1489, %v1586
    %1588 = vmatprep.mubr.f32.mxu0 0.0
    %1589 = vmatmul.mubr.f32.gmra.mrb[0].mxu0 %v1510
    %v1590 = vpop.f32.mrb[0].mxu0
    %v1591 = vadd.f32 %v1494, %v1590
    %v1592 = vpop.f32.mrb[0].mxu0
    %v1593 = vadd.f32 %v1494, %v1592
    %1594 = vmatprep.mubr.f32.mxu0 0.0
    %1595 = vmatmul.mubr.f32.gmra.mrb[0].mxu0 %v1513
    %v1596 = vpop.f32.mrb[0].mxu0
    %v1597 = vadd.f32 %v1499, %v1596
    %v1598 = vpop.f32.mrb[0].mxu0
    %v1599 = vadd.f32 %v1499, %v1598
    %1600 = vmatprep.mubr.f32.mxu0 0.0
    %1601 = vmatmul.mubr.f32.gmra.mrb[0].mxu0 %v1516
    %v1602 = vpop.f32.mrb[0].mxu0
    %v1603 = vadd.f32 %v1504, %v1602
    %v1604 = vpop.f32.mrb[0].mxu0
    %v1605 = vadd.f32 %v1504, %v1604
    %1606 = vdwg.mxu0
    %vm1607 = vcmp.ge.f32.partialorder %v1585, 0.0
    %vm1608 = vcmp.ge.f32.partialorder %v1587, 0.0
    %vm1609 = vcmp.ge.f32.partialorder %v1591, 0.0
    %vm1610 = vcmp.ge.f32.partialorder %v1593, 0.0
    %vm1611 = vcmp.ge.f32.partialorder %v1597, 0.0
    %vm1612 = vcmp.ge.f32.partialorder %v1599, 0.0
    %vm1613 = vcmp.ge.f32.partialorder %v1603, 0.0
    %vm1614 = vcmp.ge.f32.partialorder %v1605, 0.0
    %v1615 = vmul.f32 %v1585, 0.2
    %v1616 = vmul.f32 %v1587, 0.2
    %v1617 = vmul.f32 %v1591, 0.2
    %v1618 = vmul.f32 %v1593, 0.2
    %v1619 = vmul.f32 %v1597, 0.2
    %v1620 = vmul.f32 %v1599, 0.2
    %v1621 = vmul.f32 %v1603, 0.2
    %v1622 = vmul.f32 %v1605, 0.2
    %v1623 = vsel %vm1607, %v1585, %v1615
    %v1624 = vsel %vm1608, %v1587, %v1616
    %v1625 = vsel %vm1609, %v1591, %v1617
    %v1626 = vsel %vm1610, %v1593, %v1618
    %v1627 = vsel %vm1611, %v1597, %v1619
    %v1628 = vsel %vm1612, %v1599, %v1620
    %v1629 = vsel %vm1613, %v1603, %v1621
    %v1630 = vsel %vm1614, %v1605, %v1622
    %v1631 = vld [vmem:[%s899] sm:$0xff]
    %v1632 = vld [vmem:[%s899 + $0x8] sm:$0xff]
    %v1633 = vld [vmem:[%s899 + $0x10] sm:$0xff]
    %v1634 = vld [vmem:[%s899 + $0x18] sm:$0xff]
    %v1635 = vlaneseq
    %v1636 = vshrl.u32 %v1635, 7
    %v1637 = vsub.s32 1, %v1636
    %v1638 = vrot.slane %v411, %v1637
    %v1639 = vmul.f32 %v1631, %v1638
    %v1640 = vmul.f32 %v1632, %v1638
    %v1641 = vmul.f32 %v1633, %v1638
    %v1642 = vmul.f32 %v1634, %v1638
    %v1643 = vld [vmem:[%s912] sm:$0xff]
    %v1644 = vld [vmem:[%s912 + $0x8] sm:$0xff]
    %v1645 = vld [vmem:[%s912 + $0x10] sm:$0xff]
    %v1646 = vld [vmem:[%s912 + $0x18] sm:$0xff]
    %1648 = vset.pattern.permute.xlu0 0
    %1649 = vperm.xlu0 %1648, %v1643
    %v1650 = vpop.permute.xlu0 %1649
    %1653 = vset.pattern.permute.xlu0 0
    %1654 = vperm.xlu0 %1653, %v1644
    %v1655 = vpop.permute.xlu0 %1654
    %1658 = vset.pattern.permute.xlu0 0
    %1659 = vperm.xlu0 %1658, %v1645
    %v1660 = vpop.permute.xlu0 %1659
    %1663 = vset.pattern.permute.xlu0 0
    %1664 = vperm.xlu0 %1663, %v1646
    %v1665 = vpop.permute.xlu0 %1664
    %v1668 = vsel %vm73, %v1639, 0
    %v1671 = vsel %vm73, %v1640, 0
    %v1674 = vsel %vm73, %v1641, 0
    %v1677 = vsel %vm73, %v1642, 0
    %1679 = vmatprep.subr.mxu0 %v1624
    %1680 = vmatpush1.msra.mxu0 %v1623
    %1681 = vmatprep.subr.mxu0 %v1626
    %1682 = vmatpush1.msra.mxu0 %v1625
    %1683 = vmatprep.subr.mxu0 %v1628
    %1684 = vmatpush1.msra.mxu0 %v1627
    %1685 = vmatprep.subr.mxu0 %v1630
    %1686 = vmatpush1.msra.mxu0 %v1629
    %1687 = vmatprep.subr.mxu0 0.0
    %1688 = vmatpush1.msra.mxu0 0.0
    %1689 = vmatprep.subr.mxu0 0.0
    %1690 = vmatpush1.msra.mxu0 0.0
    %1691 = vmatprep.subr.mxu0 0.0
    %1692 = vmatpush1.msra.mxu0 0.0
    %1693 = vmatprep.subr.mxu0 0.0
    %1694 = vmatpush1.msra.mxu0 0.0
    %1695 = vmatprep.subr.mxu0 0.0
    %1696 = vmatpush1.msra.mxu0 0.0
    %1697 = vmatprep.subr.mxu0 0.0
    %1698 = vmatpush1.msra.mxu0 0.0
    %1699 = vmatprep.subr.mxu0 0.0
    %1700 = vmatpush1.msra.mxu0 0.0
    %1701 = vmatprep.subr.mxu0 0.0
    %1702 = vmatpush1.msra.mxu0 0.0
    %1703 = vmatprep.subr.mxu0 0.0
    %1704 = vmatpush1.msra.mxu0 0.0
    %1705 = vmatprep.subr.mxu0 0.0
    %1706 = vmatpush1.msra.mxu0 0.0
    %1707 = vmatprep.subr.mxu0 0.0
    %1708 = vmatpush1.msra.mxu0 0.0
    %1709 = vmatprep.subr.mxu0 0.0
    %1710 = vmatpush1.msra.mxu0 0.0
    %1711 = vmatprep.subr.mxu0 0.0
    %1712 = vmatpush1.msra.mxu0 0.0
    %1713 = vmatprep.subr.mxu0 0.0
    %1714 = vmatpush1.msra.mxu0 0.0
    %1715 = vmatprep.subr.mxu0 0.0
    %1716 = vmatpush1.msra.mxu0 0.0
    %1717 = vmatprep.subr.mxu0 0.0
    %1718 = vmatpush1.msra.mxu0 0.0
    %1719 = vmatprep.subr.mxu0 0.0
    %1720 = vmatpush1.msra.mxu0 0.0
    %1721 = vmatprep.subr.mxu0 0.0
    %1722 = vmatpush1.msra.mxu0 0.0
    %1723 = vmatprep.subr.mxu0 0.0
    %1724 = vmatpush1.msra.mxu0 0.0
    %1725 = vmatprep.subr.mxu0 0.0
    %1726 = vmatpush1.msra.mxu0 0.0
    %1727 = vmatprep.subr.mxu0 0.0
    %1728 = vmatpush1.msra.mxu0 0.0
    %1729 = vmatprep.subr.mxu0 0.0
    %1730 = vmatpush1.msra.mxu0 0.0
    %1731 = vmatprep.subr.mxu0 0.0
    %1732 = vmatpush1.msra.mxu0 0.0
    %1733 = vmatprep.subr.mxu0 0.0
    %1734 = vmatpush1.msra.mxu0 0.0
    %1735 = vmatprep.subr.mxu0 0.0
    %1736 = vmatpush1.msra.mxu0 0.0
    %1737 = vmatprep.subr.mxu0 0.0
    %1738 = vmatpush1.msra.mxu0 0.0
    %1739 = vmatprep.subr.mxu0 0.0
    %1740 = vmatpush1.msra.mxu0 0.0
    %1741 = vmatprep.subr.mxu0 0.0
    %1742 = vmatpush1.msra.mxu0 0.0
    %1743 = vmatprep.mubr.f32.mxu0 0.0
    %1744 = vmatmul.mubr.f32.gmra.mrb[0].mxu0 %v1668
    %v1745 = vpop.f32.mrb[0].mxu0
    %v1746 = vadd.f32 %v1650, %v1745
    %v1747 = vpop.f32.mrb[0].mxu0
    %v1748 = vadd.f32 %v1650, %v1747
    %1749 = vmatprep.mubr.f32.mxu0 0.0
    %1750 = vmatmul.mubr.f32.gmra.mrb[0].mxu0 %v1671
    %v1751 = vpop.f32.mrb[0].mxu0
    %v1752 = vadd.f32 %v1655, %v1751
    %v1753 = vpop.f32.mrb[0].mxu0
    %v1754 = vadd.f32 %v1655, %v1753
    %1755 = vmatprep.mubr.f32.mxu0 0.0
    %1756 = vmatmul.mubr.f32.gmra.mrb[0].mxu0 %v1674
    %v1757 = vpop.f32.mrb[0].mxu0
    %v1758 = vadd.f32 %v1660, %v1757
    %v1759 = vpop.f32.mrb[0].mxu0
    %v1760 = vadd.f32 %v1660, %v1759
    %1761 = vmatprep.mubr.f32.mxu0 0.0
    %1762 = vmatmul.mubr.f32.gmra.mrb[0].mxu0 %v1677
    %v1763 = vpop.f32.mrb[0].mxu0
    %v1764 = vadd.f32 %v1665, %v1763
    %v1765 = vpop.f32.mrb[0].mxu0
    %v1766 = vadd.f32 %v1665, %v1765
    %1767 = vdwg.mxu0
    %vm1768 = vcmp.ge.f32.partialorder %v1746, 0.0
    %vm1769 = vcmp.ge.f32.partialorder %v1748, 0.0
    %vm1770 = vcmp.ge.f32.partialorder %v1752, 0.0
    %vm1771 = vcmp.ge.f32.partialorder %v1754, 0.0
    %vm1772 = vcmp.ge.f32.partialorder %v1758, 0.0
    %vm1773 = vcmp.ge.f32.partialorder %v1760, 0.0
    %vm1774 = vcmp.ge.f32.partialorder %v1764, 0.0
    %vm1775 = vcmp.ge.f32.partialorder %v1766, 0.0
    %v1776 = vmul.f32 %v1746, 0.2
    %v1777 = vmul.f32 %v1748, 0.2
    %v1778 = vmul.f32 %v1752, 0.2
    %v1779 = vmul.f32 %v1754, 0.2
    %v1780 = vmul.f32 %v1758, 0.2
    %v1781 = vmul.f32 %v1760, 0.2
    %v1782 = vmul.f32 %v1764, 0.2
    %v1783 = vmul.f32 %v1766, 0.2
    %v1784 = vsel %vm1768, %v1746, %v1776
    %v1785 = vsel %vm1769, %v1748, %v1777
    %v1786 = vsel %vm1770, %v1752, %v1778
    %v1787 = vsel %vm1771, %v1754, %v1779
    %v1788 = vsel %vm1772, %v1758, %v1780
    %v1789 = vsel %vm1773, %v1760, %v1781
    %v1790 = vsel %vm1774, %v1764, %v1782
    %v1791 = vsel %vm1775, %v1766, %v1783
    %v1792 = vld [vmem:[%s6] sm:$0x7]
    %v1793 = vld [vmem:[%s7] sm:$0x7]
    %1795 = vset.pattern.permute.xlu0 0
    %1796 = vperm.xlu0 %1795, %v1793
    %v1797 = vpop.permute.xlu0 %1796
    %v1800 = vsel %vm73, %v1792, 0
    %1802 = vmatprep.subr.mxu0 %v1785
    %1803 = vmatpush1.msra.mxu0 %v1784
    %1804 = vmatprep.subr.mxu0 %v1787
    %1805 = vmatpush1.msra.mxu0 %v1786
    %1806 = vmatprep.subr.mxu0 %v1789
    %1807 = vmatpush1.msra.mxu0 %v1788
    %1808 = vmatprep.subr.mxu0 %v1791
    %1809 = vmatpush1.msra.mxu0 %v1790
    %1810 = vmatprep.subr.mxu0 0.0
    %1811 = vmatpush1.msra.mxu0 0.0
    %1812 = vmatprep.subr.mxu0 0.0
    %1813 = vmatpush1.msra.mxu0 0.0
    %1814 = vmatprep.subr.mxu0 0.0
    %1815 = vmatpush1.msra.mxu0 0.0
    %1816 = vmatprep.subr.mxu0 0.0
    %1817 = vmatpush1.msra.mxu0 0.0
    %1818 = vmatprep.subr.mxu0 0.0
    %1819 = vmatpush1.msra.mxu0 0.0
    %1820 = vmatprep.subr.mxu0 0.0
    %1821 = vmatpush1.msra.mxu0 0.0
    %1822 = vmatprep.subr.mxu0 0.0
    %1823 = vmatpush1.msra.mxu0 0.0
    %1824 = vmatprep.subr.mxu0 0.0
    %1825 = vmatpush1.msra.mxu0 0.0
    %1826 = vmatprep.subr.mxu0 0.0
    %1827 = vmatpush1.msra.mxu0 0.0
    %1828 = vmatprep.subr.mxu0 0.0
    %1829 = vmatpush1.msra.mxu0 0.0
    %1830 = vmatprep.subr.mxu0 0.0
    %1831 = vmatpush1.msra.mxu0 0.0
    %1832 = vmatprep.subr.mxu0 0.0
    %1833 = vmatpush1.msra.mxu0 0.0
    %1834 = vmatprep.subr.mxu0 0.0
    %1835 = vmatpush1.msra.mxu0 0.0
    %1836 = vmatprep.subr.mxu0 0.0
    %1837 = vmatpush1.msra.mxu0 0.0
    %1838 = vmatprep.subr.mxu0 0.0
    %1839 = vmatpush1.msra.mxu0 0.0
    %1840 = vmatprep.subr.mxu0 0.0
    %1841 = vmatpush1.msra.mxu0 0.0
    %1842 = vmatprep.subr.mxu0 0.0
    %1843 = vmatpush1.msra.mxu0 0.0
    %1844 = vmatprep.subr.mxu0 0.0
    %1845 = vmatpush1.msra.mxu0 0.0
    %1846 = vmatprep.subr.mxu0 0.0
    %1847 = vmatpush1.msra.mxu0 0.0
    %1848 = vmatprep.subr.mxu0 0.0
    %1849 = vmatpush1.msra.mxu0 0.0
    %1850 = vmatprep.subr.mxu0 0.0
    %1851 = vmatpush1.msra.mxu0 0.0
    %1852 = vmatprep.subr.mxu0 0.0
    %1853 = vmatpush1.msra.mxu0 0.0
    %1854 = vmatprep.subr.mxu0 0.0
    %1855 = vmatpush1.msra.mxu0 0.0
    %1856 = vmatprep.subr.mxu0 0.0
    %1857 = vmatpush1.msra.mxu0 0.0
    %1858 = vmatprep.subr.mxu0 0.0
    %1859 = vmatpush1.msra.mxu0 0.0
    %1860 = vmatprep.subr.mxu0 0.0
    %1861 = vmatpush1.msra.mxu0 0.0
    %1862 = vmatprep.subr.mxu0 0.0
    %1863 = vmatpush1.msra.mxu0 0.0
    %1864 = vmatprep.subr.mxu0 0.0
    %1865 = vmatpush1.msra.mxu0 0.0
    %1866 = vmatprep.mubr.f32.mxu0 0.0
    %1867 = vmatmul.mubr.f32.gmra.mrb[0].mxu0 %v1800
    %v1868 = vpop.f32.mrb[0].mxu0
    %v1869 = vadd.f32 %v1797, %v1868
    %v1870 = vpop.f32.mrb[0].mxu0
    %v1871 = vadd.f32 %v1797, %v1870
    %1872 = vdwg.mxu0
    %v1875 = vcombine.low %v1869, %v1871
    %s1877 = scalar_lea.vmem %s8, 8
    %1878 = vst [vmem:[%s1877] sm:$0x77] %v1875
    // Predicated region
    $region42: #{tpu_custom_call.1} parent=1 // pred_check
      _
    $region43: #{tpu_custom_call.1} parent=1 // pred_check_branch
      %1880 = sbr.rel (0) target = $region45
    $region44: #{tpu_custom_call.1} parent=1 // pred_region
      _
    $region45: #{tpu_custom_call.1} parent=1 // pred_fallthru
      _
    // Predicated region
    $region46: #{tpu_custom_call.1} parent=1 // pred_check
      _
    $region47: #{tpu_custom_call.1} parent=1 // pred_check_branch
      %1882 = sbr.rel (0) target = $region49
    $region48: #{tpu_custom_call.1} parent=1 // pred_region
      _
    $region49: #{tpu_custom_call.1} parent=1 // pred_fallthru
      _
    %1883 = vsyncpa [#allocation3], 1
    %1884 = vsyncpa [#allocation5], 1

</llo_original>
